<compile_context>
chip_gen: v5e
topology: v5e:2x2
jax: 0.10.0
libtpu: 0.0.40
codegen_flags: <defaults>
</compile_context>

<pallas_src>
import functools

import numpy as np
import jax
import jax.numpy as jnp
from jax import lax
from jax.experimental import pallas as pl
from jax.experimental.pallas import tpu as pltpu


def _round_up(n, m):
    return -(-n // m) * m


# ----------------------------------------------------------------------------
# Fused Pallas kernel: n-layer bidirectional LSTM + fused (seg | topic) head
# ----------------------------------------------------------------------------
def _fused_kernel(x_ref, p_ref, out_ref, *, T, B, H, n_layers, d_ins, offs, head_cols):
    """x_ref   [T, B, Din]       time-major padded input (VMEM)
       p_ref   [R, C]            packed parameter slab (VMEM); layout per `offs`:
                 offs[l] = (r_wih, r_whh, r_b)
                   wih_l [Din_l, 8H]  cols = fwd gates (i|f|o|g) | bwd gates (i|f|o|g)
                   whh_l [2H, 4H]     vstack(fwd, bwd), gate order i|f|o|g
                   b_l   [1, 8H]      b_ih + b_hh, fwd | bwd
                 offs[n_layers] = (r_whead, r_bhead)
                   whead [2H, head_cols] = [Ws_seg | Ws_topic | 0]
                   bhead [1,  head_cols]
       out_ref [T*B, head_cols]  head logits (seg logits | topic logits | 0)
    """
    f32 = jnp.float32
    H4, H8 = 4 * H, 8 * H

    # Stacked-state rebuild mask, computed ONCE: rows 0:B keep cols 0:H (fwd half),
    # rows B:2B keep cols H:2H (bwd half).
    rows = lax.broadcasted_iota(jnp.int32, (2 * B, 2 * H), 0)
    cols = lax.broadcasted_iota(jnp.int32, (2 * B, 2 * H), 1)
    mask2 = (((rows < B) & (cols < H)) | ((rows >= B) & (cols >= H))).astype(f32)

    cur_in = x_ref[...].reshape(T * B, d_ins[0])

    for layer in range(n_layers):
        r_wih, r_whh, r_b = offs[layer]
        din = d_ins[layer]
        wih = p_ref[r_wih:r_wih + din, 0:H8]
        whh = p_ref[r_whh:r_whh + 2 * H, 0:H4]
        b = p_ref[r_b:r_b + 1, 0:H8]

        # Hoisted input projection: ONE MXU matmul per layer, biases folded in.
        xg = (jnp.dot(cur_in, wih, preferred_element_type=f32) + b).reshape(T, B, H8)
        # Hoisted bidirectional gate-input assembly (off the serial chain): fwd consumes
        # time t, bwd consumes time T-1-t (incl. padding, matching the reference).
        gb_rev = jnp.concatenate([xg[T - 1 - t, :, H4:][None] for t in range(T)], axis=0)
        xg2 = jnp.concatenate([xg[:, :, :H4], gb_rev], axis=1)          # [T, 2B, 4H]

        # Serial recurrence: stacked [2B, .] state computes both directions in one dot
        # (2B = 8 fills the vreg sublanes at B = 4).
        h2 = jnp.zeros((2 * B, 2 * H), f32)
        c = jnp.zeros((2 * B, H), f32)
        hs_f = [None] * T
        hs_b = [None] * T
        # TODO(synk): for large T switch to lax.fori_loop(..., unroll=4..8) with hidden
        # states written to VMEM scratch; full unroll is only appropriate at T ~ 8.
        for t in range(T):                                               # fully unrolled
            gates = jnp.dot(h2, whh, preferred_element_type=f32) + xg2[t]  # [2B, 4H]
            sg = jax.nn.sigmoid(gates[:, 0:3 * H])                       # i|f|o, one push
            gg = jnp.tanh(gates[:, 3 * H:H4])                            # g
            c = sg[:, H:2 * H] * c + sg[:, 0:H] * gg
            h = sg[:, 2 * H:3 * H] * jnp.tanh(c)                         # [2B, H]
            hs_f[t] = h[:B]                                              # fwd hidden, time t
            hs_b[T - 1 - t] = h[B:]                                      # bwd hidden, time T-1-t
            h2 = jnp.concatenate([h, h], axis=1) * mask2                 # rebuild stacked state

        h_f = jnp.concatenate([v[None] for v in hs_f], axis=0)           # [T, B, H]
        h_b = jnp.concatenate([v[None] for v in hs_b], axis=0)           # [T, B, H]
        cur_in = jnp.concatenate([h_f, h_b], axis=2).reshape(T * B, 2 * H)

    # Fused heads: one [T*B, 2H] x [2H, 128] MXU dot -> lane-dense, unmasked output stores.
    r_wh, r_bh = offs[n_layers]
    whead = p_ref[r_wh:r_wh + 2 * H, 0:head_cols]
    bhead = p_ref[r_bh:r_bh + 1, 0:head_cols]
    out_ref[...] = jnp.dot(cur_in, whead, preferred_element_type=f32) + bhead


def _fused_forward(x_tbd, params, *, H, n_layers, d_ins, offs, head_cols):
    T, B, _ = x_tbd.shape
    vmem = pl.BlockSpec(memory_space=pltpu.MemorySpace.VMEM)
    # TODO(synk): for large T/B add a time-chunked grid ("arbitrary" axis over T with h/c
    # carried in scratch) and a batch-parallel leading axis for v7x's 2 TensorCores /
    # 64 MiB VMEM; unnecessary at this scale (everything fits VMEM comfortably).
    return pl.pallas_call(
        functools.partial(_fused_kernel, T=T, B=B, H=H, n_layers=n_layers,
                          d_ins=d_ins, offs=offs, head_cols=head_cols),
        out_shape=jax.ShapeDtypeStruct((T * B, head_cols), jnp.float32),
        in_specs=[vmem, vmem],
        out_specs=vmem,
    )(x_tbd, params)


@functools.partial(jax.jit, static_argnames=("H", "n_layers", "d_ins", "offs",
                                             "head_cols", "O", "K", "top"))
def _forward_padded(x_tbd, params, *, H, n_layers, d_ins, offs, head_cols, O, K, top):
    T, B, _ = x_tbd.shape
    logits = _fused_forward(x_tbd, params, H=H, n_layers=n_layers, d_ins=d_ins,
                            offs=offs, head_cols=head_cols)            # [T*B, head_cols]
    seg_prob = jax.nn.softmax(logits[:, 0:O], axis=-1)                 # exact f32 softmax
    seg_p = seg_prob.reshape(T, B, O).transpose(1, 0, 2)[..., 0]       # [B, T] channel-0 prob
    seg_l = (seg_p >= top).astype(jnp.int32)                           # torch.ge(prob, 0.7)
    topic = logits[:, O:O + K].reshape(T, B, K).transpose(1, 0, 2)     # [B, T, K] logits
    return seg_p, seg_l, topic


# ----------------------------------------------------------------------------
# Module: parameter init + host-side packing + forward (eval mode)
# ----------------------------------------------------------------------------
class LSTMClassifierPallas:
    def __init__(self, topic_size, input_dim=32, hidden_dim=16, output_dim=2,
                 n_layers=2, bidirectional=True, key=jax.random.PRNGKey(42)):
        assert bidirectional, "reference module is used with bidirectional=True"
        self.topic_size = topic_size
        self.input_dim = input_dim
        self.hidden_dim = hidden_dim
        self.output_dim = output_dim
        self.n_layers = n_layers
        self.top = 0.7

        H = hidden_dim
        k = float(1.0 / np.sqrt(H))
        keys = jax.random.split(key, 2 + n_layers * 2 * 4)

        def reorder(w):  # PyTorch gate order i|f|g|o  ->  kernel order i|f|o|g (last axis)
            return np.concatenate([w[..., 0:2 * H], w[..., 3 * H:4 * H],
                                   w[..., 2 * H:3 * H]], axis=-1)

        ws_seg = np.asarray(jax.random.uniform(keys[0], (2 * H, output_dim),
                                               jnp.float32, -0.1, 0.1))
        bs_seg = np.zeros((output_dim,), np.float32)
        ws_top = np.asarray(jax.random.uniform(keys[1], (2 * H, topic_size),
                                               jnp.float32, -0.1, 0.1))
        bs_top = np.zeros((topic_size,), np.float32)

        # per-layer packed LSTM weights (kernel gate order, fwd | bwd)
        layer_packs, d_ins = [], []
        ki = 2
        for layer in range(n_layers):
            d_in = input_dim if layer == 0 else 2 * H
            d_ins.append(d_in)
            dirs = []
            for _ in range(2):  # forward, backward
                w_ih = np.asarray(jax.random.uniform(keys[ki], (d_in, 4 * H),
                                                     jnp.float32, -k, k)); ki += 1
                w_hh = np.asarray(jax.random.uniform(keys[ki], (H, 4 * H),
                                                     jnp.float32, -k, k)); ki += 1
                b_ih = np.asarray(jax.random.uniform(keys[ki], (4 * H,),
                                                     jnp.float32, -k, k)); ki += 1
                b_hh = np.asarray(jax.random.uniform(keys[ki], (4 * H,),
                                                     jnp.float32, -k, k)); ki += 1
                dirs.append((reorder(w_ih), reorder(w_hh), reorder(b_ih + b_hh)))
            (wf, whf, bf), (wb, whb, bb) = dirs
            layer_packs.append((np.concatenate([wf, wb], axis=1),       # [d_in, 8H]
                                np.concatenate([whf, whb], axis=0),     # [2H, 4H]
                                np.concatenate([bf, bb])[None, :]))     # [1, 8H]

        # fused head weights: [Ws_seg | Ws_topic | 0], padded to a 128-lane-dense slab
        self.head_cols = _round_up(output_dim + topic_size, 128)
        whead = np.zeros((2 * H, self.head_cols), np.float32)
        whead[:, 0:output_dim] = ws_seg
        whead[:, output_dim:output_dim + topic_size] = ws_top
        bhead = np.zeros((1, self.head_cols), np.float32)
        bhead[0, 0:output_dim] = bs_seg
        bhead[0, output_dim:output_dim + topic_size] = bs_top

        # single parameter slab (ONE input DMA): rows 8-aligned, columns padded to 128
        C = _round_up(max(8 * H, self.head_cols), 128)
        offs, r = [], 0
        for layer in range(n_layers):
            r_wih, r = r, r + _round_up(d_ins[layer], 8)
            r_whh, r = r, r + _round_up(2 * H, 8)
            r_b, r = r, r + 8
            offs.append((r_wih, r_whh, r_b))
        r_wh, r = r, r + _round_up(2 * H, 8)
        r_bh, r = r, r + 8
        offs.append((r_wh, r_bh))
        slab = np.zeros((_round_up(r, 8), C), np.float32)
        for layer in range(n_layers):
            wih, whh, b = layer_packs[layer]
            r_wih, r_whh, r_b = offs[layer]
            slab[r_wih:r_wih + wih.shape[0], 0:8 * H] = wih
            slab[r_whh:r_whh + 2 * H, 0:4 * H] = whh
            slab[r_b:r_b + 1, 0:8 * H] = b
        slab[r_wh:r_wh + 2 * H, 0:self.head_cols] = whead
        slab[r_bh:r_bh + 1, 0:self.head_cols] = bhead

        self.params = jnp.asarray(slab)
        self.offs = tuple(tuple(o) for o in offs)
        self.d_ins = tuple(d_ins)
        # TODO(synk): nn.LSTM dropout=0.5 applies only between layers in training mode;
        # eval-mode inference semantics are implemented here.
        # TODO(synk): on v6e/v7x the MXU matmuls could take bf16 inputs (f32 accumulate);
        # kept f32 to preserve exact 0.7-threshold label decisions at this tiny scale.

    def _pad(self, papers):
        # Host-side numpy padding (single device transfer), directly in TIME-MAJOR layout.
        lens = [int(p.shape[0]) for p in papers]
        B, T, D = len(papers), max(lens), self.input_dim
        buf = np.zeros((T, B, D), np.float32)
        for i, p in enumerate(papers):
            buf[:lens[i], i, :] = np.asarray(p, dtype=np.float32)
        return jnp.asarray(buf), lens

    def forward(self, papers):
        x_tbd, lens = self._pad(papers)                                 # [T, B, Din]
        seg_p, seg_l, topic = _forward_padded(
            x_tbd, self.params, H=self.hidden_dim, n_layers=self.n_layers,
            d_ins=self.d_ins, offs=self.offs, head_cols=self.head_cols,
            O=self.output_dim, K=self.topic_size, top=self.top)
        segment_probability_papers = [seg_p[i, :L] for i, L in enumerate(lens)]
        segment_label_papers = [seg_l[i, :L] for i, L in enumerate(lens)]
        topic_probability_papers = [topic[i, :L] for i, L in enumerate(lens)]
        return segment_probability_papers, segment_label_papers, topic_probability_papers


if __name__ == "__main__":
    key = jax.random.PRNGKey(0)
    topic_size, input_dim, hidden_dim = 6, 32, 16
    lens = [8, 6, 5, 7]
    keys = jax.random.split(key, len(lens))
    papers = [jax.random.normal(k, (L, input_dim), jnp.float32)
              for k, L in zip(keys, lens)]

    model = LSTMClassifierPallas(topic_size=topic_size, input_dim=input_dim,
                                 hidden_dim=hidden_dim)
    seg_prob, seg_label, topic_prob = model.forward(papers)

    for a in seg_prob + seg_label + topic_prob:
        jax.block_until_ready(a)

    # sanity checks on shapes / dtypes
    assert [a.shape for a in seg_prob] == [(L,) for L in lens]
    assert [a.shape for a in seg_label] == [(L,) for L in lens]
    assert [a.shape for a in topic_prob] == [(L, topic_size) for L in lens]
    assert seg_label[0].dtype == jnp.int32
    print("KERNEL_OK")
</pallas_src>

<mosaic_0001>
module attributes {stable_mosaic.version = 11 : i64} {
  func.func @_fused_kernel(%arg0: memref<8x4x32xf32, #tpu.memory_space<vmem>>, %arg1: memref<184x128xf32, #tpu.memory_space<vmem>>, %arg2: memref<32x128xf32, #tpu.memory_space<vmem>>) attributes {dimension_semantics = [], scalar_prefetch = 0 : i64, scratch_operands = 0 : i64, tpu.core_type = #tpu.core_type<tc>} {
    %0 = tpu.iota {dimensions = array<i32: 0>} : vector<8x32xi32>
    %1 = tpu.iota {dimensions = array<i32: 1>} : vector<8x32xi32>
    %c4_i32 = arith.constant 4 : i32
    %2 = vector.broadcast %c4_i32 : i32 to vector<8x32xi32>
    %3 = arith.cmpi slt, %0, %2 : vector<8x32xi32>
    %c16_i32 = arith.constant 16 : i32
    %4 = vector.broadcast %c16_i32 : i32 to vector<8x32xi32>
    %5 = arith.cmpi slt, %1, %4 : vector<8x32xi32>
    %6 = arith.andi %3, %5 : vector<8x32xi1>
    %c4_i32_0 = arith.constant 4 : i32
    %7 = vector.broadcast %c4_i32_0 : i32 to vector<8x32xi32>
    %8 = arith.cmpi sge, %0, %7 : vector<8x32xi32>
    %c16_i32_1 = arith.constant 16 : i32
    %9 = vector.broadcast %c16_i32_1 : i32 to vector<8x32xi32>
    %10 = arith.cmpi sge, %1, %9 : vector<8x32xi32>
    %11 = arith.andi %8, %10 : vector<8x32xi1>
    %12 = arith.ori %6, %11 : vector<8x32xi1>
    %13 = arith.extui %12 : vector<8x32xi1> to vector<8x32xi32>
    %14 = arith.sitofp %13 : vector<8x32xi32> to vector<8x32xf32>
    %c0 = arith.constant 0 : index
    %c0_2 = arith.constant 0 : index
    %c0_3 = arith.constant 0 : index
    %15 = vector.load %arg0[%c0, %c0_2, %c0_3] : memref<8x4x32xf32, #tpu.memory_space<vmem>>, vector<8x4x32xf32>
    %16 = vector.shape_cast %15 : vector<8x4x32xf32> to vector<32x32xf32>
    %c0_4 = arith.constant 0 : index
    %c0_5 = arith.constant 0 : index
    %17 = vector.load %arg1[%c0_4, %c0_5] : memref<184x128xf32, #tpu.memory_space<vmem>>, vector<32x128xf32>
    %c32 = arith.constant 32 : index
    %c0_6 = arith.constant 0 : index
    %18 = vector.load %arg1[%c32, %c0_6] : memref<184x128xf32, #tpu.memory_space<vmem>>, vector<32x64xf32>
    %c64 = arith.constant 64 : index
    %c0_7 = arith.constant 0 : index
    %19 = vector.load %arg1[%c64, %c0_7] : memref<184x128xf32, #tpu.memory_space<vmem>>, vector<1x128xf32>
    %cst = arith.constant dense<0.000000e+00> : vector<32x128xf32>
    %20 = tpu.matmul %16, %17, %cst {dimension_numbers = #tpu.dot_dimension_numbers<[1], [0], [0], [1], [0, 0, 1, 1], [], []>} : vector<32x32xf32>, vector<32x128xf32>, vector<32x128xf32> -> vector<32x128xf32>
    %21 = vector.broadcast %19 : vector<1x128xf32> to vector<32x128xf32>
    %22 = arith.addf %20, %21 : vector<32x128xf32>
    %23 = vector.shape_cast %22 : vector<32x128xf32> to vector<8x4x128xf32>
    %24 = vector.extract_strided_slice %23 {offsets = [7, 0, 64], sizes = [1, 4, 64], strides = [1, 1, 1]} : vector<8x4x128xf32> to vector<1x4x64xf32>
    %25 = vector.shape_cast %24 : vector<1x4x64xf32> to vector<4x64xf32>
    %26 = vector.shape_cast %25 : vector<4x64xf32> to vector<1x4x64xf32>
    %27 = vector.extract_strided_slice %23 {offsets = [6, 0, 64], sizes = [1, 4, 64], strides = [1, 1, 1]} : vector<8x4x128xf32> to vector<1x4x64xf32>
    %28 = vector.shape_cast %27 : vector<1x4x64xf32> to vector<4x64xf32>
    %29 = vector.shape_cast %28 : vector<4x64xf32> to vector<1x4x64xf32>
    %30 = vector.extract_strided_slice %23 {offsets = [5, 0, 64], sizes = [1, 4, 64], strides = [1, 1, 1]} : vector<8x4x128xf32> to vector<1x4x64xf32>
    %31 = vector.shape_cast %30 : vector<1x4x64xf32> to vector<4x64xf32>
    %32 = vector.shape_cast %31 : vector<4x64xf32> to vector<1x4x64xf32>
    %33 = vector.extract_strided_slice %23 {offsets = [4, 0, 64], sizes = [1, 4, 64], strides = [1, 1, 1]} : vector<8x4x128xf32> to vector<1x4x64xf32>
    %34 = vector.shape_cast %33 : vector<1x4x64xf32> to vector<4x64xf32>
    %35 = vector.shape_cast %34 : vector<4x64xf32> to vector<1x4x64xf32>
    %36 = vector.extract_strided_slice %23 {offsets = [3, 0, 64], sizes = [1, 4, 64], strides = [1, 1, 1]} : vector<8x4x128xf32> to vector<1x4x64xf32>
    %37 = vector.shape_cast %36 : vector<1x4x64xf32> to vector<4x64xf32>
    %38 = vector.shape_cast %37 : vector<4x64xf32> to vector<1x4x64xf32>
    %39 = vector.extract_strided_slice %23 {offsets = [2, 0, 64], sizes = [1, 4, 64], strides = [1, 1, 1]} : vector<8x4x128xf32> to vector<1x4x64xf32>
    %40 = vector.shape_cast %39 : vector<1x4x64xf32> to vector<4x64xf32>
    %41 = vector.shape_cast %40 : vector<4x64xf32> to vector<1x4x64xf32>
    %42 = vector.extract_strided_slice %23 {offsets = [1, 0, 64], sizes = [1, 4, 64], strides = [1, 1, 1]} : vector<8x4x128xf32> to vector<1x4x64xf32>
    %43 = vector.shape_cast %42 : vector<1x4x64xf32> to vector<4x64xf32>
    %44 = vector.shape_cast %43 : vector<4x64xf32> to vector<1x4x64xf32>
    %45 = vector.extract_strided_slice %23 {offsets = [0, 0, 64], sizes = [1, 4, 64], strides = [1, 1, 1]} : vector<8x4x128xf32> to vector<1x4x64xf32>
    %46 = vector.shape_cast %45 : vector<1x4x64xf32> to vector<4x64xf32>
    %47 = vector.shape_cast %46 : vector<4x64xf32> to vector<1x4x64xf32>
    %48 = tpu.concatenate %26, %29, %32, %35, %38, %41, %44, %47 in 0 : vector<1x4x64xf32>, vector<1x4x64xf32>, vector<1x4x64xf32>, vector<1x4x64xf32>, vector<1x4x64xf32>, vector<1x4x64xf32>, vector<1x4x64xf32>, vector<1x4x64xf32> -> vector<8x4x64xf32>
    %49 = vector.extract_strided_slice %23 {offsets = [0, 0, 0], sizes = [8, 4, 64], strides = [1, 1, 1]} : vector<8x4x128xf32> to vector<8x4x64xf32>
    %50 = tpu.concatenate %49, %48 in 1 : vector<8x4x64xf32>, vector<8x4x64xf32> -> vector<8x8x64xf32>
    %cst_8 = arith.constant 0.000000e+00 : f32
    %51 = vector.broadcast %cst_8 : f32 to vector<8x32xf32>
    %cst_9 = arith.constant 0.000000e+00 : f32
    %52 = vector.broadcast %cst_9 : f32 to vector<8x16xf32>
    %cst_10 = arith.constant dense<0.000000e+00> : vector<8x64xf32>
    %53 = tpu.matmul %51, %18, %cst_10 {dimension_numbers = #tpu.dot_dimension_numbers<[1], [0], [0], [1], [0, 0, 1, 1], [], []>} : vector<8x32xf32>, vector<32x64xf32>, vector<8x64xf32> -> vector<8x64xf32>
    %54 = vector.extract_strided_slice %50 {offsets = [0, 0, 0], sizes = [1, 8, 64], strides = [1, 1, 1]} : vector<8x8x64xf32> to vector<1x8x64xf32>
    %55 = vector.shape_cast %54 : vector<1x8x64xf32> to vector<8x64xf32>
    %56 = arith.addf %53, %55 : vector<8x64xf32>
    %57 = vector.extract_strided_slice %56 {offsets = [0, 0], sizes = [8, 48], strides = [1, 1]} : vector<8x64xf32> to vector<8x48xf32>
    %58 = arith.negf %57 : vector<8x48xf32>
    %59 = math.exp %58 : vector<8x48xf32>
    %cst_11 = arith.constant 1.000000e+00 : f32
    %60 = vector.broadcast %cst_11 : f32 to vector<8x48xf32>
    %61 = arith.addf %60, %59 : vector<8x48xf32>
    %62 = arith.divf %60, %61 : vector<8x48xf32>
    %63 = vector.extract_strided_slice %56 {offsets = [0, 48], sizes = [8, 16], strides = [1, 1]} : vector<8x64xf32> to vector<8x16xf32>
    %64 = math.tanh %63 : vector<8x16xf32>
    %65 = vector.extract_strided_slice %62 {offsets = [0, 16], sizes = [8, 16], strides = [1, 1]} : vector<8x48xf32> to vector<8x16xf32>
    %66 = arith.mulf %65, %52 : vector<8x16xf32>
    %67 = vector.extract_strided_slice %62 {offsets = [0, 0], sizes = [8, 16], strides = [1, 1]} : vector<8x48xf32> to vector<8x16xf32>
    %68 = arith.mulf %67, %64 : vector<8x16xf32>
    %69 = arith.addf %66, %68 : vector<8x16xf32>
    %70 = vector.extract_strided_slice %62 {offsets = [0, 32], sizes = [8, 16], strides = [1, 1]} : vector<8x48xf32> to vector<8x16xf32>
    %71 = math.tanh %69 : vector<8x16xf32>
    %72 = arith.mulf %70, %71 : vector<8x16xf32>
    %73 = vector.extract_strided_slice %72 {offsets = [0, 0], sizes = [4, 16], strides = [1, 1]} : vector<8x16xf32> to vector<4x16xf32>
    %74 = vector.extract_strided_slice %72 {offsets = [4, 0], sizes = [4, 16], strides = [1, 1]} : vector<8x16xf32> to vector<4x16xf32>
    %75 = tpu.concatenate %72, %72 in 1 : vector<8x16xf32>, vector<8x16xf32> -> vector<8x32xf32>
    %76 = arith.mulf %75, %14 : vector<8x32xf32>
    %cst_12 = arith.constant dense<0.000000e+00> : vector<8x64xf32>
    %77 = tpu.matmul %76, %18, %cst_12 {dimension_numbers = #tpu.dot_dimension_numbers<[1], [0], [0], [1], [0, 0, 1, 1], [], []>} : vector<8x32xf32>, vector<32x64xf32>, vector<8x64xf32> -> vector<8x64xf32>
    %78 = vector.extract_strided_slice %50 {offsets = [1, 0, 0], sizes = [1, 8, 64], strides = [1, 1, 1]} : vector<8x8x64xf32> to vector<1x8x64xf32>
    %79 = vector.shape_cast %78 : vector<1x8x64xf32> to vector<8x64xf32>
    %80 = arith.addf %77, %79 : vector<8x64xf32>
    %81 = vector.extract_strided_slice %80 {offsets = [0, 0], sizes = [8, 48], strides = [1, 1]} : vector<8x64xf32> to vector<8x48xf32>
    %82 = arith.negf %81 : vector<8x48xf32>
    %83 = math.exp %82 : vector<8x48xf32>
    %cst_13 = arith.constant 1.000000e+00 : f32
    %84 = vector.broadcast %cst_13 : f32 to vector<8x48xf32>
    %85 = arith.addf %84, %83 : vector<8x48xf32>
    %86 = arith.divf %84, %85 : vector<8x48xf32>
    %87 = vector.extract_strided_slice %80 {offsets = [0, 48], sizes = [8, 16], strides = [1, 1]} : vector<8x64xf32> to vector<8x16xf32>
    %88 = math.tanh %87 : vector<8x16xf32>
    %89 = vector.extract_strided_slice %86 {offsets = [0, 16], sizes = [8, 16], strides = [1, 1]} : vector<8x48xf32> to vector<8x16xf32>
    %90 = arith.mulf %89, %69 : vector<8x16xf32>
    %91 = vector.extract_strided_slice %86 {offsets = [0, 0], sizes = [8, 16], strides = [1, 1]} : vector<8x48xf32> to vector<8x16xf32>
    %92 = arith.mulf %91, %88 : vector<8x16xf32>
    %93 = arith.addf %90, %92 : vector<8x16xf32>
    %94 = vector.extract_strided_slice %86 {offsets = [0, 32], sizes = [8, 16], strides = [1, 1]} : vector<8x48xf32> to vector<8x16xf32>
    %95 = math.tanh %93 : vector<8x16xf32>
    %96 = arith.mulf %94, %95 : vector<8x16xf32>
    %97 = vector.extract_strided_slice %96 {offsets = [0, 0], sizes = [4, 16], strides = [1, 1]} : vector<8x16xf32> to vector<4x16xf32>
    %98 = vector.extract_strided_slice %96 {offsets = [4, 0], sizes = [4, 16], strides = [1, 1]} : vector<8x16xf32> to vector<4x16xf32>
    %99 = tpu.concatenate %96, %96 in 1 : vector<8x16xf32>, vector<8x16xf32> -> vector<8x32xf32>
    %100 = arith.mulf %99, %14 : vector<8x32xf32>
    %cst_14 = arith.constant dense<0.000000e+00> : vector<8x64xf32>
    %101 = tpu.matmul %100, %18, %cst_14 {dimension_numbers = #tpu.dot_dimension_numbers<[1], [0], [0], [1], [0, 0, 1, 1], [], []>} : vector<8x32xf32>, vector<32x64xf32>, vector<8x64xf32> -> vector<8x64xf32>
    %102 = vector.extract_strided_slice %50 {offsets = [2, 0, 0], sizes = [1, 8, 64], strides = [1, 1, 1]} : vector<8x8x64xf32> to vector<1x8x64xf32>
    %103 = vector.shape_cast %102 : vector<1x8x64xf32> to vector<8x64xf32>
    %104 = arith.addf %101, %103 : vector<8x64xf32>
    %105 = vector.extract_strided_slice %104 {offsets = [0, 0], sizes = [8, 48], strides = [1, 1]} : vector<8x64xf32> to vector<8x48xf32>
    %106 = arith.negf %105 : vector<8x48xf32>
    %107 = math.exp %106 : vector<8x48xf32>
    %cst_15 = arith.constant 1.000000e+00 : f32
    %108 = vector.broadcast %cst_15 : f32 to vector<8x48xf32>
    %109 = arith.addf %108, %107 : vector<8x48xf32>
    %110 = arith.divf %108, %109 : vector<8x48xf32>
    %111 = vector.extract_strided_slice %104 {offsets = [0, 48], sizes = [8, 16], strides = [1, 1]} : vector<8x64xf32> to vector<8x16xf32>
    %112 = math.tanh %111 : vector<8x16xf32>
    %113 = vector.extract_strided_slice %110 {offsets = [0, 16], sizes = [8, 16], strides = [1, 1]} : vector<8x48xf32> to vector<8x16xf32>
    %114 = arith.mulf %113, %93 : vector<8x16xf32>
    %115 = vector.extract_strided_slice %110 {offsets = [0, 0], sizes = [8, 16], strides = [1, 1]} : vector<8x48xf32> to vector<8x16xf32>
    %116 = arith.mulf %115, %112 : vector<8x16xf32>
    %117 = arith.addf %114, %116 : vector<8x16xf32>
    %118 = vector.extract_strided_slice %110 {offsets = [0, 32], sizes = [8, 16], strides = [1, 1]} : vector<8x48xf32> to vector<8x16xf32>
    %119 = math.tanh %117 : vector<8x16xf32>
    %120 = arith.mulf %118, %119 : vector<8x16xf32>
    %121 = vector.extract_strided_slice %120 {offsets = [0, 0], sizes = [4, 16], strides = [1, 1]} : vector<8x16xf32> to vector<4x16xf32>
    %122 = vector.extract_strided_slice %120 {offsets = [4, 0], sizes = [4, 16], strides = [1, 1]} : vector<8x16xf32> to vector<4x16xf32>
    %123 = tpu.concatenate %120, %120 in 1 : vector<8x16xf32>, vector<8x16xf32> -> vector<8x32xf32>
    %124 = arith.mulf %123, %14 : vector<8x32xf32>
    %cst_16 = arith.constant dense<0.000000e+00> : vector<8x64xf32>
    %125 = tpu.matmul %124, %18, %cst_16 {dimension_numbers = #tpu.dot_dimension_numbers<[1], [0], [0], [1], [0, 0, 1, 1], [], []>} : vector<8x32xf32>, vector<32x64xf32>, vector<8x64xf32> -> vector<8x64xf32>
    %126 = vector.extract_strided_slice %50 {offsets = [3, 0, 0], sizes = [1, 8, 64], strides = [1, 1, 1]} : vector<8x8x64xf32> to vector<1x8x64xf32>
    %127 = vector.shape_cast %126 : vector<1x8x64xf32> to vector<8x64xf32>
    %128 = arith.addf %125, %127 : vector<8x64xf32>
    %129 = vector.extract_strided_slice %128 {offsets = [0, 0], sizes = [8, 48], strides = [1, 1]} : vector<8x64xf32> to vector<8x48xf32>
    %130 = arith.negf %129 : vector<8x48xf32>
    %131 = math.exp %130 : vector<8x48xf32>
    %cst_17 = arith.constant 1.000000e+00 : f32
    %132 = vector.broadcast %cst_17 : f32 to vector<8x48xf32>
    %133 = arith.addf %132, %131 : vector<8x48xf32>
    %134 = arith.divf %132, %133 : vector<8x48xf32>
    %135 = vector.extract_strided_slice %128 {offsets = [0, 48], sizes = [8, 16], strides = [1, 1]} : vector<8x64xf32> to vector<8x16xf32>
    %136 = math.tanh %135 : vector<8x16xf32>
    %137 = vector.extract_strided_slice %134 {offsets = [0, 16], sizes = [8, 16], strides = [1, 1]} : vector<8x48xf32> to vector<8x16xf32>
    %138 = arith.mulf %137, %117 : vector<8x16xf32>
    %139 = vector.extract_strided_slice %134 {offsets = [0, 0], sizes = [8, 16], strides = [1, 1]} : vector<8x48xf32> to vector<8x16xf32>
    %140 = arith.mulf %139, %136 : vector<8x16xf32>
    %141 = arith.addf %138, %140 : vector<8x16xf32>
    %142 = vector.extract_strided_slice %134 {offsets = [0, 32], sizes = [8, 16], strides = [1, 1]} : vector<8x48xf32> to vector<8x16xf32>
    %143 = math.tanh %141 : vector<8x16xf32>
    %144 = arith.mulf %142, %143 : vector<8x16xf32>
    %145 = vector.extract_strided_slice %144 {offsets = [0, 0], sizes = [4, 16], strides = [1, 1]} : vector<8x16xf32> to vector<4x16xf32>
    %146 = vector.extract_strided_slice %144 {offsets = [4, 0], sizes = [4, 16], strides = [1, 1]} : vector<8x16xf32> to vector<4x16xf32>
    %147 = tpu.concatenate %144, %144 in 1 : vector<8x16xf32>, vector<8x16xf32> -> vector<8x32xf32>
    %148 = arith.mulf %147, %14 : vector<8x32xf32>
    %cst_18 = arith.constant dense<0.000000e+00> : vector<8x64xf32>
    %149 = tpu.matmul %148, %18, %cst_18 {dimension_numbers = #tpu.dot_dimension_numbers<[1], [0], [0], [1], [0, 0, 1, 1], [], []>} : vector<8x32xf32>, vector<32x64xf32>, vector<8x64xf32> -> vector<8x64xf32>
    %150 = vector.extract_strided_slice %50 {offsets = [4, 0, 0], sizes = [1, 8, 64], strides = [1, 1, 1]} : vector<8x8x64xf32> to vector<1x8x64xf32>
    %151 = vector.shape_cast %150 : vector<1x8x64xf32> to vector<8x64xf32>
    %152 = arith.addf %149, %151 : vector<8x64xf32>
    %153 = vector.extract_strided_slice %152 {offsets = [0, 0], sizes = [8, 48], strides = [1, 1]} : vector<8x64xf32> to vector<8x48xf32>
    %154 = arith.negf %153 : vector<8x48xf32>
    %155 = math.exp %154 : vector<8x48xf32>
    %cst_19 = arith.constant 1.000000e+00 : f32
    %156 = vector.broadcast %cst_19 : f32 to vector<8x48xf32>
    %157 = arith.addf %156, %155 : vector<8x48xf32>
    %158 = arith.divf %156, %157 : vector<8x48xf32>
    %159 = vector.extract_strided_slice %152 {offsets = [0, 48], sizes = [8, 16], strides = [1, 1]} : vector<8x64xf32> to vector<8x16xf32>
    %160 = math.tanh %159 : vector<8x16xf32>
    %161 = vector.extract_strided_slice %158 {offsets = [0, 16], sizes = [8, 16], strides = [1, 1]} : vector<8x48xf32> to vector<8x16xf32>
    %162 = arith.mulf %161, %141 : vector<8x16xf32>
    %163 = vector.extract_strided_slice %158 {offsets = [0, 0], sizes = [8, 16], strides = [1, 1]} : vector<8x48xf32> to vector<8x16xf32>
    %164 = arith.mulf %163, %160 : vector<8x16xf32>
    %165 = arith.addf %162, %164 : vector<8x16xf32>
    %166 = vector.extract_strided_slice %158 {offsets = [0, 32], sizes = [8, 16], strides = [1, 1]} : vector<8x48xf32> to vector<8x16xf32>
    %167 = math.tanh %165 : vector<8x16xf32>
    %168 = arith.mulf %166, %167 : vector<8x16xf32>
    %169 = vector.extract_strided_slice %168 {offsets = [0, 0], sizes = [4, 16], strides = [1, 1]} : vector<8x16xf32> to vector<4x16xf32>
    %170 = vector.extract_strided_slice %168 {offsets = [4, 0], sizes = [4, 16], strides = [1, 1]} : vector<8x16xf32> to vector<4x16xf32>
    %171 = tpu.concatenate %168, %168 in 1 : vector<8x16xf32>, vector<8x16xf32> -> vector<8x32xf32>
    %172 = arith.mulf %171, %14 : vector<8x32xf32>
    %cst_20 = arith.constant dense<0.000000e+00> : vector<8x64xf32>
    %173 = tpu.matmul %172, %18, %cst_20 {dimension_numbers = #tpu.dot_dimension_numbers<[1], [0], [0], [1], [0, 0, 1, 1], [], []>} : vector<8x32xf32>, vector<32x64xf32>, vector<8x64xf32> -> vector<8x64xf32>
    %174 = vector.extract_strided_slice %50 {offsets = [5, 0, 0], sizes = [1, 8, 64], strides = [1, 1, 1]} : vector<8x8x64xf32> to vector<1x8x64xf32>
    %175 = vector.shape_cast %174 : vector<1x8x64xf32> to vector<8x64xf32>
    %176 = arith.addf %173, %175 : vector<8x64xf32>
    %177 = vector.extract_strided_slice %176 {offsets = [0, 0], sizes = [8, 48], strides = [1, 1]} : vector<8x64xf32> to vector<8x48xf32>
    %178 = arith.negf %177 : vector<8x48xf32>
    %179 = math.exp %178 : vector<8x48xf32>
    %cst_21 = arith.constant 1.000000e+00 : f32
    %180 = vector.broadcast %cst_21 : f32 to vector<8x48xf32>
    %181 = arith.addf %180, %179 : vector<8x48xf32>
    %182 = arith.divf %180, %181 : vector<8x48xf32>
    %183 = vector.extract_strided_slice %176 {offsets = [0, 48], sizes = [8, 16], strides = [1, 1]} : vector<8x64xf32> to vector<8x16xf32>
    %184 = math.tanh %183 : vector<8x16xf32>
    %185 = vector.extract_strided_slice %182 {offsets = [0, 16], sizes = [8, 16], strides = [1, 1]} : vector<8x48xf32> to vector<8x16xf32>
    %186 = arith.mulf %185, %165 : vector<8x16xf32>
    %187 = vector.extract_strided_slice %182 {offsets = [0, 0], sizes = [8, 16], strides = [1, 1]} : vector<8x48xf32> to vector<8x16xf32>
    %188 = arith.mulf %187, %184 : vector<8x16xf32>
    %189 = arith.addf %186, %188 : vector<8x16xf32>
    %190 = vector.extract_strided_slice %182 {offsets = [0, 32], sizes = [8, 16], strides = [1, 1]} : vector<8x48xf32> to vector<8x16xf32>
    %191 = math.tanh %189 : vector<8x16xf32>
    %192 = arith.mulf %190, %191 : vector<8x16xf32>
    %193 = vector.extract_strided_slice %192 {offsets = [0, 0], sizes = [4, 16], strides = [1, 1]} : vector<8x16xf32> to vector<4x16xf32>
    %194 = vector.extract_strided_slice %192 {offsets = [4, 0], sizes = [4, 16], strides = [1, 1]} : vector<8x16xf32> to vector<4x16xf32>
    %195 = tpu.concatenate %192, %192 in 1 : vector<8x16xf32>, vector<8x16xf32> -> vector<8x32xf32>
    %196 = arith.mulf %195, %14 : vector<8x32xf32>
    %cst_22 = arith.constant dense<0.000000e+00> : vector<8x64xf32>
    %197 = tpu.matmul %196, %18, %cst_22 {dimension_numbers = #tpu.dot_dimension_numbers<[1], [0], [0], [1], [0, 0, 1, 1], [], []>} : vector<8x32xf32>, vector<32x64xf32>, vector<8x64xf32> -> vector<8x64xf32>
    %198 = vector.extract_strided_slice %50 {offsets = [6, 0, 0], sizes = [1, 8, 64], strides = [1, 1, 1]} : vector<8x8x64xf32> to vector<1x8x64xf32>
    %199 = vector.shape_cast %198 : vector<1x8x64xf32> to vector<8x64xf32>
    %200 = arith.addf %197, %199 : vector<8x64xf32>
    %201 = vector.extract_strided_slice %200 {offsets = [0, 0], sizes = [8, 48], strides = [1, 1]} : vector<8x64xf32> to vector<8x48xf32>
    %202 = arith.negf %201 : vector<8x48xf32>
    %203 = math.exp %202 : vector<8x48xf32>
    %cst_23 = arith.constant 1.000000e+00 : f32
    %204 = vector.broadcast %cst_23 : f32 to vector<8x48xf32>
    %205 = arith.addf %204, %203 : vector<8x48xf32>
    %206 = arith.divf %204, %205 : vector<8x48xf32>
    %207 = vector.extract_strided_slice %200 {offsets = [0, 48], sizes = [8, 16], strides = [1, 1]} : vector<8x64xf32> to vector<8x16xf32>
    %208 = math.tanh %207 : vector<8x16xf32>
    %209 = vector.extract_strided_slice %206 {offsets = [0, 16], sizes = [8, 16], strides = [1, 1]} : vector<8x48xf32> to vector<8x16xf32>
    %210 = arith.mulf %209, %189 : vector<8x16xf32>
    %211 = vector.extract_strided_slice %206 {offsets = [0, 0], sizes = [8, 16], strides = [1, 1]} : vector<8x48xf32> to vector<8x16xf32>
    %212 = arith.mulf %211, %208 : vector<8x16xf32>
    %213 = arith.addf %210, %212 : vector<8x16xf32>
    %214 = vector.extract_strided_slice %206 {offsets = [0, 32], sizes = [8, 16], strides = [1, 1]} : vector<8x48xf32> to vector<8x16xf32>
    %215 = math.tanh %213 : vector<8x16xf32>
    %216 = arith.mulf %214, %215 : vector<8x16xf32>
    %217 = vector.extract_strided_slice %216 {offsets = [0, 0], sizes = [4, 16], strides = [1, 1]} : vector<8x16xf32> to vector<4x16xf32>
    %218 = vector.extract_strided_slice %216 {offsets = [4, 0], sizes = [4, 16], strides = [1, 1]} : vector<8x16xf32> to vector<4x16xf32>
    %219 = tpu.concatenate %216, %216 in 1 : vector<8x16xf32>, vector<8x16xf32> -> vector<8x32xf32>
    %220 = arith.mulf %219, %14 : vector<8x32xf32>
    %cst_24 = arith.constant dense<0.000000e+00> : vector<8x64xf32>
    %221 = tpu.matmul %220, %18, %cst_24 {dimension_numbers = #tpu.dot_dimension_numbers<[1], [0], [0], [1], [0, 0, 1, 1], [], []>} : vector<8x32xf32>, vector<32x64xf32>, vector<8x64xf32> -> vector<8x64xf32>
    %222 = vector.extract_strided_slice %50 {offsets = [7, 0, 0], sizes = [1, 8, 64], strides = [1, 1, 1]} : vector<8x8x64xf32> to vector<1x8x64xf32>
    %223 = vector.shape_cast %222 : vector<1x8x64xf32> to vector<8x64xf32>
    %224 = arith.addf %221, %223 : vector<8x64xf32>
    %225 = vector.extract_strided_slice %224 {offsets = [0, 0], sizes = [8, 48], strides = [1, 1]} : vector<8x64xf32> to vector<8x48xf32>
    %226 = arith.negf %225 : vector<8x48xf32>
    %227 = math.exp %226 : vector<8x48xf32>
    %cst_25 = arith.constant 1.000000e+00 : f32
    %228 = vector.broadcast %cst_25 : f32 to vector<8x48xf32>
    %229 = arith.addf %228, %227 : vector<8x48xf32>
    %230 = arith.divf %228, %229 : vector<8x48xf32>
    %231 = vector.extract_strided_slice %224 {offsets = [0, 48], sizes = [8, 16], strides = [1, 1]} : vector<8x64xf32> to vector<8x16xf32>
    %232 = math.tanh %231 : vector<8x16xf32>
    %233 = vector.extract_strided_slice %230 {offsets = [0, 16], sizes = [8, 16], strides = [1, 1]} : vector<8x48xf32> to vector<8x16xf32>
    %234 = arith.mulf %233, %213 : vector<8x16xf32>
    %235 = vector.extract_strided_slice %230 {offsets = [0, 0], sizes = [8, 16], strides = [1, 1]} : vector<8x48xf32> to vector<8x16xf32>
    %236 = arith.mulf %235, %232 : vector<8x16xf32>
    %237 = arith.addf %234, %236 : vector<8x16xf32>
    %238 = vector.extract_strided_slice %230 {offsets = [0, 32], sizes = [8, 16], strides = [1, 1]} : vector<8x48xf32> to vector<8x16xf32>
    %239 = math.tanh %237 : vector<8x16xf32>
    %240 = arith.mulf %238, %239 : vector<8x16xf32>
    %241 = vector.extract_strided_slice %240 {offsets = [0, 0], sizes = [4, 16], strides = [1, 1]} : vector<8x16xf32> to vector<4x16xf32>
    %242 = vector.extract_strided_slice %240 {offsets = [4, 0], sizes = [4, 16], strides = [1, 1]} : vector<8x16xf32> to vector<4x16xf32>
    %243 = vector.shape_cast %73 : vector<4x16xf32> to vector<1x4x16xf32>
    %244 = vector.shape_cast %97 : vector<4x16xf32> to vector<1x4x16xf32>
    %245 = vector.shape_cast %121 : vector<4x16xf32> to vector<1x4x16xf32>
    %246 = vector.shape_cast %145 : vector<4x16xf32> to vector<1x4x16xf32>
    %247 = vector.shape_cast %169 : vector<4x16xf32> to vector<1x4x16xf32>
    %248 = vector.shape_cast %193 : vector<4x16xf32> to vector<1x4x16xf32>
    %249 = vector.shape_cast %217 : vector<4x16xf32> to vector<1x4x16xf32>
    %250 = vector.shape_cast %241 : vector<4x16xf32> to vector<1x4x16xf32>
    %251 = tpu.concatenate %243, %244, %245, %246, %247, %248, %249, %250 in 0 : vector<1x4x16xf32>, vector<1x4x16xf32>, vector<1x4x16xf32>, vector<1x4x16xf32>, vector<1x4x16xf32>, vector<1x4x16xf32>, vector<1x4x16xf32>, vector<1x4x16xf32> -> vector<8x4x16xf32>
    %252 = vector.shape_cast %242 : vector<4x16xf32> to vector<1x4x16xf32>
    %253 = vector.shape_cast %218 : vector<4x16xf32> to vector<1x4x16xf32>
    %254 = vector.shape_cast %194 : vector<4x16xf32> to vector<1x4x16xf32>
    %255 = vector.shape_cast %170 : vector<4x16xf32> to vector<1x4x16xf32>
    %256 = vector.shape_cast %146 : vector<4x16xf32> to vector<1x4x16xf32>
    %257 = vector.shape_cast %122 : vector<4x16xf32> to vector<1x4x16xf32>
    %258 = vector.shape_cast %98 : vector<4x16xf32> to vector<1x4x16xf32>
    %259 = vector.shape_cast %74 : vector<4x16xf32> to vector<1x4x16xf32>
    %260 = tpu.concatenate %252, %253, %254, %255, %256, %257, %258, %259 in 0 : vector<1x4x16xf32>, vector<1x4x16xf32>, vector<1x4x16xf32>, vector<1x4x16xf32>, vector<1x4x16xf32>, vector<1x4x16xf32>, vector<1x4x16xf32>, vector<1x4x16xf32> -> vector<8x4x16xf32>
    %261 = tpu.concatenate %251, %260 in 2 : vector<8x4x16xf32>, vector<8x4x16xf32> -> vector<8x4x32xf32>
    %262 = vector.shape_cast %261 : vector<8x4x32xf32> to vector<32x32xf32>
    %c72 = arith.constant 72 : index
    %c0_26 = arith.constant 0 : index
    %263 = vector.load %arg1[%c72, %c0_26] : memref<184x128xf32, #tpu.memory_space<vmem>>, vector<32x128xf32>
    %c104 = arith.constant 104 : index
    %c0_27 = arith.constant 0 : index
    %264 = vector.load %arg1[%c104, %c0_27] : memref<184x128xf32, #tpu.memory_space<vmem>>, vector<32x64xf32>
    %c136 = arith.constant 136 : index
    %c0_28 = arith.constant 0 : index
    %265 = vector.load %arg1[%c136, %c0_28] : memref<184x128xf32, #tpu.memory_space<vmem>>, vector<1x128xf32>
    %cst_29 = arith.constant dense<0.000000e+00> : vector<32x128xf32>
    %266 = tpu.matmul %262, %263, %cst_29 {dimension_numbers = #tpu.dot_dimension_numbers<[1], [0], [0], [1], [0, 0, 1, 1], [], []>} : vector<32x32xf32>, vector<32x128xf32>, vector<32x128xf32> -> vector<32x128xf32>
    %267 = vector.broadcast %265 : vector<1x128xf32> to vector<32x128xf32>
    %268 = arith.addf %266, %267 : vector<32x128xf32>
    %269 = vector.shape_cast %268 : vector<32x128xf32> to vector<8x4x128xf32>
    %270 = vector.extract_strided_slice %269 {offsets = [7, 0, 64], sizes = [1, 4, 64], strides = [1, 1, 1]} : vector<8x4x128xf32> to vector<1x4x64xf32>
    %271 = vector.shape_cast %270 : vector<1x4x64xf32> to vector<4x64xf32>
    %272 = vector.shape_cast %271 : vector<4x64xf32> to vector<1x4x64xf32>
    %273 = vector.extract_strided_slice %269 {offsets = [6, 0, 64], sizes = [1, 4, 64], strides = [1, 1, 1]} : vector<8x4x128xf32> to vector<1x4x64xf32>
    %274 = vector.shape_cast %273 : vector<1x4x64xf32> to vector<4x64xf32>
    %275 = vector.shape_cast %274 : vector<4x64xf32> to vector<1x4x64xf32>
    %276 = vector.extract_strided_slice %269 {offsets = [5, 0, 64], sizes = [1, 4, 64], strides = [1, 1, 1]} : vector<8x4x128xf32> to vector<1x4x64xf32>
    %277 = vector.shape_cast %276 : vector<1x4x64xf32> to vector<4x64xf32>
    %278 = vector.shape_cast %277 : vector<4x64xf32> to vector<1x4x64xf32>
    %279 = vector.extract_strided_slice %269 {offsets = [4, 0, 64], sizes = [1, 4, 64], strides = [1, 1, 1]} : vector<8x4x128xf32> to vector<1x4x64xf32>
    %280 = vector.shape_cast %279 : vector<1x4x64xf32> to vector<4x64xf32>
    %281 = vector.shape_cast %280 : vector<4x64xf32> to vector<1x4x64xf32>
    %282 = vector.extract_strided_slice %269 {offsets = [3, 0, 64], sizes = [1, 4, 64], strides = [1, 1, 1]} : vector<8x4x128xf32> to vector<1x4x64xf32>
    %283 = vector.shape_cast %282 : vector<1x4x64xf32> to vector<4x64xf32>
    %284 = vector.shape_cast %283 : vector<4x64xf32> to vector<1x4x64xf32>
    %285 = vector.extract_strided_slice %269 {offsets = [2, 0, 64], sizes = [1, 4, 64], strides = [1, 1, 1]} : vector<8x4x128xf32> to vector<1x4x64xf32>
    %286 = vector.shape_cast %285 : vector<1x4x64xf32> to vector<4x64xf32>
    %287 = vector.shape_cast %286 : vector<4x64xf32> to vector<1x4x64xf32>
    %288 = vector.extract_strided_slice %269 {offsets = [1, 0, 64], sizes = [1, 4, 64], strides = [1, 1, 1]} : vector<8x4x128xf32> to vector<1x4x64xf32>
    %289 = vector.shape_cast %288 : vector<1x4x64xf32> to vector<4x64xf32>
    %290 = vector.shape_cast %289 : vector<4x64xf32> to vector<1x4x64xf32>
    %291 = vector.extract_strided_slice %269 {offsets = [0, 0, 64], sizes = [1, 4, 64], strides = [1, 1, 1]} : vector<8x4x128xf32> to vector<1x4x64xf32>
    %292 = vector.shape_cast %291 : vector<1x4x64xf32> to vector<4x64xf32>
    %293 = vector.shape_cast %292 : vector<4x64xf32> to vector<1x4x64xf32>
    %294 = tpu.concatenate %272, %275, %278, %281, %284, %287, %290, %293 in 0 : vector<1x4x64xf32>, vector<1x4x64xf32>, vector<1x4x64xf32>, vector<1x4x64xf32>, vector<1x4x64xf32>, vector<1x4x64xf32>, vector<1x4x64xf32>, vector<1x4x64xf32> -> vector<8x4x64xf32>
    %295 = vector.extract_strided_slice %269 {offsets = [0, 0, 0], sizes = [8, 4, 64], strides = [1, 1, 1]} : vector<8x4x128xf32> to vector<8x4x64xf32>
    %296 = tpu.concatenate %295, %294 in 1 : vector<8x4x64xf32>, vector<8x4x64xf32> -> vector<8x8x64xf32>
    %cst_30 = arith.constant 0.000000e+00 : f32
    %297 = vector.broadcast %cst_30 : f32 to vector<8x32xf32>
    %cst_31 = arith.constant 0.000000e+00 : f32
    %298 = vector.broadcast %cst_31 : f32 to vector<8x16xf32>
    %cst_32 = arith.constant dense<0.000000e+00> : vector<8x64xf32>
    %299 = tpu.matmul %297, %264, %cst_32 {dimension_numbers = #tpu.dot_dimension_numbers<[1], [0], [0], [1], [0, 0, 1, 1], [], []>} : vector<8x32xf32>, vector<32x64xf32>, vector<8x64xf32> -> vector<8x64xf32>
    %300 = vector.extract_strided_slice %296 {offsets = [0, 0, 0], sizes = [1, 8, 64], strides = [1, 1, 1]} : vector<8x8x64xf32> to vector<1x8x64xf32>
    %301 = vector.shape_cast %300 : vector<1x8x64xf32> to vector<8x64xf32>
    %302 = arith.addf %299, %301 : vector<8x64xf32>
    %303 = vector.extract_strided_slice %302 {offsets = [0, 0], sizes = [8, 48], strides = [1, 1]} : vector<8x64xf32> to vector<8x48xf32>
    %304 = arith.negf %303 : vector<8x48xf32>
    %305 = math.exp %304 : vector<8x48xf32>
    %cst_33 = arith.constant 1.000000e+00 : f32
    %306 = vector.broadcast %cst_33 : f32 to vector<8x48xf32>
    %307 = arith.addf %306, %305 : vector<8x48xf32>
    %308 = arith.divf %306, %307 : vector<8x48xf32>
    %309 = vector.extract_strided_slice %302 {offsets = [0, 48], sizes = [8, 16], strides = [1, 1]} : vector<8x64xf32> to vector<8x16xf32>
    %310 = math.tanh %309 : vector<8x16xf32>
    %311 = vector.extract_strided_slice %308 {offsets = [0, 16], sizes = [8, 16], strides = [1, 1]} : vector<8x48xf32> to vector<8x16xf32>
    %312 = arith.mulf %311, %298 : vector<8x16xf32>
    %313 = vector.extract_strided_slice %308 {offsets = [0, 0], sizes = [8, 16], strides = [1, 1]} : vector<8x48xf32> to vector<8x16xf32>
    %314 = arith.mulf %313, %310 : vector<8x16xf32>
    %315 = arith.addf %312, %314 : vector<8x16xf32>
    %316 = vector.extract_strided_slice %308 {offsets = [0, 32], sizes = [8, 16], strides = [1, 1]} : vector<8x48xf32> to vector<8x16xf32>
    %317 = math.tanh %315 : vector<8x16xf32>
    %318 = arith.mulf %316, %317 : vector<8x16xf32>
    %319 = vector.extract_strided_slice %318 {offsets = [0, 0], sizes = [4, 16], strides = [1, 1]} : vector<8x16xf32> to vector<4x16xf32>
    %320 = vector.extract_strided_slice %318 {offsets = [4, 0], sizes = [4, 16], strides = [1, 1]} : vector<8x16xf32> to vector<4x16xf32>
    %321 = tpu.concatenate %318, %318 in 1 : vector<8x16xf32>, vector<8x16xf32> -> vector<8x32xf32>
    %322 = arith.mulf %321, %14 : vector<8x32xf32>
    %cst_34 = arith.constant dense<0.000000e+00> : vector<8x64xf32>
    %323 = tpu.matmul %322, %264, %cst_34 {dimension_numbers = #tpu.dot_dimension_numbers<[1], [0], [0], [1], [0, 0, 1, 1], [], []>} : vector<8x32xf32>, vector<32x64xf32>, vector<8x64xf32> -> vector<8x64xf32>
    %324 = vector.extract_strided_slice %296 {offsets = [1, 0, 0], sizes = [1, 8, 64], strides = [1, 1, 1]} : vector<8x8x64xf32> to vector<1x8x64xf32>
    %325 = vector.shape_cast %324 : vector<1x8x64xf32> to vector<8x64xf32>
    %326 = arith.addf %323, %325 : vector<8x64xf32>
    %327 = vector.extract_strided_slice %326 {offsets = [0, 0], sizes = [8, 48], strides = [1, 1]} : vector<8x64xf32> to vector<8x48xf32>
    %328 = arith.negf %327 : vector<8x48xf32>
    %329 = math.exp %328 : vector<8x48xf32>
    %cst_35 = arith.constant 1.000000e+00 : f32
    %330 = vector.broadcast %cst_35 : f32 to vector<8x48xf32>
    %331 = arith.addf %330, %329 : vector<8x48xf32>
    %332 = arith.divf %330, %331 : vector<8x48xf32>
    %333 = vector.extract_strided_slice %326 {offsets = [0, 48], sizes = [8, 16], strides = [1, 1]} : vector<8x64xf32> to vector<8x16xf32>
    %334 = math.tanh %333 : vector<8x16xf32>
    %335 = vector.extract_strided_slice %332 {offsets = [0, 16], sizes = [8, 16], strides = [1, 1]} : vector<8x48xf32> to vector<8x16xf32>
    %336 = arith.mulf %335, %315 : vector<8x16xf32>
    %337 = vector.extract_strided_slice %332 {offsets = [0, 0], sizes = [8, 16], strides = [1, 1]} : vector<8x48xf32> to vector<8x16xf32>
    %338 = arith.mulf %337, %334 : vector<8x16xf32>
    %339 = arith.addf %336, %338 : vector<8x16xf32>
    %340 = vector.extract_strided_slice %332 {offsets = [0, 32], sizes = [8, 16], strides = [1, 1]} : vector<8x48xf32> to vector<8x16xf32>
    %341 = math.tanh %339 : vector<8x16xf32>
    %342 = arith.mulf %340, %341 : vector<8x16xf32>
    %343 = vector.extract_strided_slice %342 {offsets = [0, 0], sizes = [4, 16], strides = [1, 1]} : vector<8x16xf32> to vector<4x16xf32>
    %344 = vector.extract_strided_slice %342 {offsets = [4, 0], sizes = [4, 16], strides = [1, 1]} : vector<8x16xf32> to vector<4x16xf32>
    %345 = tpu.concatenate %342, %342 in 1 : vector<8x16xf32>, vector<8x16xf32> -> vector<8x32xf32>
    %346 = arith.mulf %345, %14 : vector<8x32xf32>
    %cst_36 = arith.constant dense<0.000000e+00> : vector<8x64xf32>
    %347 = tpu.matmul %346, %264, %cst_36 {dimension_numbers = #tpu.dot_dimension_numbers<[1], [0], [0], [1], [0, 0, 1, 1], [], []>} : vector<8x32xf32>, vector<32x64xf32>, vector<8x64xf32> -> vector<8x64xf32>
    %348 = vector.extract_strided_slice %296 {offsets = [2, 0, 0], sizes = [1, 8, 64], strides = [1, 1, 1]} : vector<8x8x64xf32> to vector<1x8x64xf32>
    %349 = vector.shape_cast %348 : vector<1x8x64xf32> to vector<8x64xf32>
    %350 = arith.addf %347, %349 : vector<8x64xf32>
    %351 = vector.extract_strided_slice %350 {offsets = [0, 0], sizes = [8, 48], strides = [1, 1]} : vector<8x64xf32> to vector<8x48xf32>
    %352 = arith.negf %351 : vector<8x48xf32>
    %353 = math.exp %352 : vector<8x48xf32>
    %cst_37 = arith.constant 1.000000e+00 : f32
    %354 = vector.broadcast %cst_37 : f32 to vector<8x48xf32>
    %355 = arith.addf %354, %353 : vector<8x48xf32>
    %356 = arith.divf %354, %355 : vector<8x48xf32>
    %357 = vector.extract_strided_slice %350 {offsets = [0, 48], sizes = [8, 16], strides = [1, 1]} : vector<8x64xf32> to vector<8x16xf32>
    %358 = math.tanh %357 : vector<8x16xf32>
    %359 = vector.extract_strided_slice %356 {offsets = [0, 16], sizes = [8, 16], strides = [1, 1]} : vector<8x48xf32> to vector<8x16xf32>
    %360 = arith.mulf %359, %339 : vector<8x16xf32>
    %361 = vector.extract_strided_slice %356 {offsets = [0, 0], sizes = [8, 16], strides = [1, 1]} : vector<8x48xf32> to vector<8x16xf32>
    %362 = arith.mulf %361, %358 : vector<8x16xf32>
    %363 = arith.addf %360, %362 : vector<8x16xf32>
    %364 = vector.extract_strided_slice %356 {offsets = [0, 32], sizes = [8, 16], strides = [1, 1]} : vector<8x48xf32> to vector<8x16xf32>
    %365 = math.tanh %363 : vector<8x16xf32>
    %366 = arith.mulf %364, %365 : vector<8x16xf32>
    %367 = vector.extract_strided_slice %366 {offsets = [0, 0], sizes = [4, 16], strides = [1, 1]} : vector<8x16xf32> to vector<4x16xf32>
    %368 = vector.extract_strided_slice %366 {offsets = [4, 0], sizes = [4, 16], strides = [1, 1]} : vector<8x16xf32> to vector<4x16xf32>
    %369 = tpu.concatenate %366, %366 in 1 : vector<8x16xf32>, vector<8x16xf32> -> vector<8x32xf32>
    %370 = arith.mulf %369, %14 : vector<8x32xf32>
    %cst_38 = arith.constant dense<0.000000e+00> : vector<8x64xf32>
    %371 = tpu.matmul %370, %264, %cst_38 {dimension_numbers = #tpu.dot_dimension_numbers<[1], [0], [0], [1], [0, 0, 1, 1], [], []>} : vector<8x32xf32>, vector<32x64xf32>, vector<8x64xf32> -> vector<8x64xf32>
    %372 = vector.extract_strided_slice %296 {offsets = [3, 0, 0], sizes = [1, 8, 64], strides = [1, 1, 1]} : vector<8x8x64xf32> to vector<1x8x64xf32>
    %373 = vector.shape_cast %372 : vector<1x8x64xf32> to vector<8x64xf32>
    %374 = arith.addf %371, %373 : vector<8x64xf32>
    %375 = vector.extract_strided_slice %374 {offsets = [0, 0], sizes = [8, 48], strides = [1, 1]} : vector<8x64xf32> to vector<8x48xf32>
    %376 = arith.negf %375 : vector<8x48xf32>
    %377 = math.exp %376 : vector<8x48xf32>
    %cst_39 = arith.constant 1.000000e+00 : f32
    %378 = vector.broadcast %cst_39 : f32 to vector<8x48xf32>
    %379 = arith.addf %378, %377 : vector<8x48xf32>
    %380 = arith.divf %378, %379 : vector<8x48xf32>
    %381 = vector.extract_strided_slice %374 {offsets = [0, 48], sizes = [8, 16], strides = [1, 1]} : vector<8x64xf32> to vector<8x16xf32>
    %382 = math.tanh %381 : vector<8x16xf32>
    %383 = vector.extract_strided_slice %380 {offsets = [0, 16], sizes = [8, 16], strides = [1, 1]} : vector<8x48xf32> to vector<8x16xf32>
    %384 = arith.mulf %383, %363 : vector<8x16xf32>
    %385 = vector.extract_strided_slice %380 {offsets = [0, 0], sizes = [8, 16], strides = [1, 1]} : vector<8x48xf32> to vector<8x16xf32>
    %386 = arith.mulf %385, %382 : vector<8x16xf32>
    %387 = arith.addf %384, %386 : vector<8x16xf32>
    %388 = vector.extract_strided_slice %380 {offsets = [0, 32], sizes = [8, 16], strides = [1, 1]} : vector<8x48xf32> to vector<8x16xf32>
    %389 = math.tanh %387 : vector<8x16xf32>
    %390 = arith.mulf %388, %389 : vector<8x16xf32>
    %391 = vector.extract_strided_slice %390 {offsets = [0, 0], sizes = [4, 16], strides = [1, 1]} : vector<8x16xf32> to vector<4x16xf32>
    %392 = vector.extract_strided_slice %390 {offsets = [4, 0], sizes = [4, 16], strides = [1, 1]} : vector<8x16xf32> to vector<4x16xf32>
    %393 = tpu.concatenate %390, %390 in 1 : vector<8x16xf32>, vector<8x16xf32> -> vector<8x32xf32>
    %394 = arith.mulf %393, %14 : vector<8x32xf32>
    %cst_40 = arith.constant dense<0.000000e+00> : vector<8x64xf32>
    %395 = tpu.matmul %394, %264, %cst_40 {dimension_numbers = #tpu.dot_dimension_numbers<[1], [0], [0], [1], [0, 0, 1, 1], [], []>} : vector<8x32xf32>, vector<32x64xf32>, vector<8x64xf32> -> vector<8x64xf32>
    %396 = vector.extract_strided_slice %296 {offsets = [4, 0, 0], sizes = [1, 8, 64], strides = [1, 1, 1]} : vector<8x8x64xf32> to vector<1x8x64xf32>
    %397 = vector.shape_cast %396 : vector<1x8x64xf32> to vector<8x64xf32>
    %398 = arith.addf %395, %397 : vector<8x64xf32>
    %399 = vector.extract_strided_slice %398 {offsets = [0, 0], sizes = [8, 48], strides = [1, 1]} : vector<8x64xf32> to vector<8x48xf32>
    %400 = arith.negf %399 : vector<8x48xf32>
    %401 = math.exp %400 : vector<8x48xf32>
    %cst_41 = arith.constant 1.000000e+00 : f32
    %402 = vector.broadcast %cst_41 : f32 to vector<8x48xf32>
    %403 = arith.addf %402, %401 : vector<8x48xf32>
    %404 = arith.divf %402, %403 : vector<8x48xf32>
    %405 = vector.extract_strided_slice %398 {offsets = [0, 48], sizes = [8, 16], strides = [1, 1]} : vector<8x64xf32> to vector<8x16xf32>
    %406 = math.tanh %405 : vector<8x16xf32>
    %407 = vector.extract_strided_slice %404 {offsets = [0, 16], sizes = [8, 16], strides = [1, 1]} : vector<8x48xf32> to vector<8x16xf32>
    %408 = arith.mulf %407, %387 : vector<8x16xf32>
    %409 = vector.extract_strided_slice %404 {offsets = [0, 0], sizes = [8, 16], strides = [1, 1]} : vector<8x48xf32> to vector<8x16xf32>
    %410 = arith.mulf %409, %406 : vector<8x16xf32>
    %411 = arith.addf %408, %410 : vector<8x16xf32>
    %412 = vector.extract_strided_slice %404 {offsets = [0, 32], sizes = [8, 16], strides = [1, 1]} : vector<8x48xf32> to vector<8x16xf32>
    %413 = math.tanh %411 : vector<8x16xf32>
    %414 = arith.mulf %412, %413 : vector<8x16xf32>
    %415 = vector.extract_strided_slice %414 {offsets = [0, 0], sizes = [4, 16], strides = [1, 1]} : vector<8x16xf32> to vector<4x16xf32>
    %416 = vector.extract_strided_slice %414 {offsets = [4, 0], sizes = [4, 16], strides = [1, 1]} : vector<8x16xf32> to vector<4x16xf32>
    %417 = tpu.concatenate %414, %414 in 1 : vector<8x16xf32>, vector<8x16xf32> -> vector<8x32xf32>
    %418 = arith.mulf %417, %14 : vector<8x32xf32>
    %cst_42 = arith.constant dense<0.000000e+00> : vector<8x64xf32>
    %419 = tpu.matmul %418, %264, %cst_42 {dimension_numbers = #tpu.dot_dimension_numbers<[1], [0], [0], [1], [0, 0, 1, 1], [], []>} : vector<8x32xf32>, vector<32x64xf32>, vector<8x64xf32> -> vector<8x64xf32>
    %420 = vector.extract_strided_slice %296 {offsets = [5, 0, 0], sizes = [1, 8, 64], strides = [1, 1, 1]} : vector<8x8x64xf32> to vector<1x8x64xf32>
    %421 = vector.shape_cast %420 : vector<1x8x64xf32> to vector<8x64xf32>
    %422 = arith.addf %419, %421 : vector<8x64xf32>
    %423 = vector.extract_strided_slice %422 {offsets = [0, 0], sizes = [8, 48], strides = [1, 1]} : vector<8x64xf32> to vector<8x48xf32>
    %424 = arith.negf %423 : vector<8x48xf32>
    %425 = math.exp %424 : vector<8x48xf32>
    %cst_43 = arith.constant 1.000000e+00 : f32
    %426 = vector.broadcast %cst_43 : f32 to vector<8x48xf32>
    %427 = arith.addf %426, %425 : vector<8x48xf32>
    %428 = arith.divf %426, %427 : vector<8x48xf32>
    %429 = vector.extract_strided_slice %422 {offsets = [0, 48], sizes = [8, 16], strides = [1, 1]} : vector<8x64xf32> to vector<8x16xf32>
    %430 = math.tanh %429 : vector<8x16xf32>
    %431 = vector.extract_strided_slice %428 {offsets = [0, 16], sizes = [8, 16], strides = [1, 1]} : vector<8x48xf32> to vector<8x16xf32>
    %432 = arith.mulf %431, %411 : vector<8x16xf32>
    %433 = vector.extract_strided_slice %428 {offsets = [0, 0], sizes = [8, 16], strides = [1, 1]} : vector<8x48xf32> to vector<8x16xf32>
    %434 = arith.mulf %433, %430 : vector<8x16xf32>
    %435 = arith.addf %432, %434 : vector<8x16xf32>
    %436 = vector.extract_strided_slice %428 {offsets = [0, 32], sizes = [8, 16], strides = [1, 1]} : vector<8x48xf32> to vector<8x16xf32>
    %437 = math.tanh %435 : vector<8x16xf32>
    %438 = arith.mulf %436, %437 : vector<8x16xf32>
    %439 = vector.extract_strided_slice %438 {offsets = [0, 0], sizes = [4, 16], strides = [1, 1]} : vector<8x16xf32> to vector<4x16xf32>
    %440 = vector.extract_strided_slice %438 {offsets = [4, 0], sizes = [4, 16], strides = [1, 1]} : vector<8x16xf32> to vector<4x16xf32>
    %441 = tpu.concatenate %438, %438 in 1 : vector<8x16xf32>, vector<8x16xf32> -> vector<8x32xf32>
    %442 = arith.mulf %441, %14 : vector<8x32xf32>
    %cst_44 = arith.constant dense<0.000000e+00> : vector<8x64xf32>
    %443 = tpu.matmul %442, %264, %cst_44 {dimension_numbers = #tpu.dot_dimension_numbers<[1], [0], [0], [1], [0, 0, 1, 1], [], []>} : vector<8x32xf32>, vector<32x64xf32>, vector<8x64xf32> -> vector<8x64xf32>
    %444 = vector.extract_strided_slice %296 {offsets = [6, 0, 0], sizes = [1, 8, 64], strides = [1, 1, 1]} : vector<8x8x64xf32> to vector<1x8x64xf32>
    %445 = vector.shape_cast %444 : vector<1x8x64xf32> to vector<8x64xf32>
    %446 = arith.addf %443, %445 : vector<8x64xf32>
    %447 = vector.extract_strided_slice %446 {offsets = [0, 0], sizes = [8, 48], strides = [1, 1]} : vector<8x64xf32> to vector<8x48xf32>
    %448 = arith.negf %447 : vector<8x48xf32>
    %449 = math.exp %448 : vector<8x48xf32>
    %cst_45 = arith.constant 1.000000e+00 : f32
    %450 = vector.broadcast %cst_45 : f32 to vector<8x48xf32>
    %451 = arith.addf %450, %449 : vector<8x48xf32>
    %452 = arith.divf %450, %451 : vector<8x48xf32>
    %453 = vector.extract_strided_slice %446 {offsets = [0, 48], sizes = [8, 16], strides = [1, 1]} : vector<8x64xf32> to vector<8x16xf32>
    %454 = math.tanh %453 : vector<8x16xf32>
    %455 = vector.extract_strided_slice %452 {offsets = [0, 16], sizes = [8, 16], strides = [1, 1]} : vector<8x48xf32> to vector<8x16xf32>
    %456 = arith.mulf %455, %435 : vector<8x16xf32>
    %457 = vector.extract_strided_slice %452 {offsets = [0, 0], sizes = [8, 16], strides = [1, 1]} : vector<8x48xf32> to vector<8x16xf32>
    %458 = arith.mulf %457, %454 : vector<8x16xf32>
    %459 = arith.addf %456, %458 : vector<8x16xf32>
    %460 = vector.extract_strided_slice %452 {offsets = [0, 32], sizes = [8, 16], strides = [1, 1]} : vector<8x48xf32> to vector<8x16xf32>
    %461 = math.tanh %459 : vector<8x16xf32>
    %462 = arith.mulf %460, %461 : vector<8x16xf32>
    %463 = vector.extract_strided_slice %462 {offsets = [0, 0], sizes = [4, 16], strides = [1, 1]} : vector<8x16xf32> to vector<4x16xf32>
    %464 = vector.extract_strided_slice %462 {offsets = [4, 0], sizes = [4, 16], strides = [1, 1]} : vector<8x16xf32> to vector<4x16xf32>
    %465 = tpu.concatenate %462, %462 in 1 : vector<8x16xf32>, vector<8x16xf32> -> vector<8x32xf32>
    %466 = arith.mulf %465, %14 : vector<8x32xf32>
    %cst_46 = arith.constant dense<0.000000e+00> : vector<8x64xf32>
    %467 = tpu.matmul %466, %264, %cst_46 {dimension_numbers = #tpu.dot_dimension_numbers<[1], [0], [0], [1], [0, 0, 1, 1], [], []>} : vector<8x32xf32>, vector<32x64xf32>, vector<8x64xf32> -> vector<8x64xf32>
    %468 = vector.extract_strided_slice %296 {offsets = [7, 0, 0], sizes = [1, 8, 64], strides = [1, 1, 1]} : vector<8x8x64xf32> to vector<1x8x64xf32>
    %469 = vector.shape_cast %468 : vector<1x8x64xf32> to vector<8x64xf32>
    %470 = arith.addf %467, %469 : vector<8x64xf32>
    %471 = vector.extract_strided_slice %470 {offsets = [0, 0], sizes = [8, 48], strides = [1, 1]} : vector<8x64xf32> to vector<8x48xf32>
    %472 = arith.negf %471 : vector<8x48xf32>
    %473 = math.exp %472 : vector<8x48xf32>
    %cst_47 = arith.constant 1.000000e+00 : f32
    %474 = vector.broadcast %cst_47 : f32 to vector<8x48xf32>
    %475 = arith.addf %474, %473 : vector<8x48xf32>
    %476 = arith.divf %474, %475 : vector<8x48xf32>
    %477 = vector.extract_strided_slice %470 {offsets = [0, 48], sizes = [8, 16], strides = [1, 1]} : vector<8x64xf32> to vector<8x16xf32>
    %478 = math.tanh %477 : vector<8x16xf32>
    %479 = vector.extract_strided_slice %476 {offsets = [0, 16], sizes = [8, 16], strides = [1, 1]} : vector<8x48xf32> to vector<8x16xf32>
    %480 = arith.mulf %479, %459 : vector<8x16xf32>
    %481 = vector.extract_strided_slice %476 {offsets = [0, 0], sizes = [8, 16], strides = [1, 1]} : vector<8x48xf32> to vector<8x16xf32>
    %482 = arith.mulf %481, %478 : vector<8x16xf32>
    %483 = arith.addf %480, %482 : vector<8x16xf32>
    %484 = vector.extract_strided_slice %476 {offsets = [0, 32], sizes = [8, 16], strides = [1, 1]} : vector<8x48xf32> to vector<8x16xf32>
    %485 = math.tanh %483 : vector<8x16xf32>
    %486 = arith.mulf %484, %485 : vector<8x16xf32>
    %487 = vector.extract_strided_slice %486 {offsets = [0, 0], sizes = [4, 16], strides = [1, 1]} : vector<8x16xf32> to vector<4x16xf32>
    %488 = vector.extract_strided_slice %486 {offsets = [4, 0], sizes = [4, 16], strides = [1, 1]} : vector<8x16xf32> to vector<4x16xf32>
    %489 = vector.shape_cast %319 : vector<4x16xf32> to vector<1x4x16xf32>
    %490 = vector.shape_cast %343 : vector<4x16xf32> to vector<1x4x16xf32>
    %491 = vector.shape_cast %367 : vector<4x16xf32> to vector<1x4x16xf32>
    %492 = vector.shape_cast %391 : vector<4x16xf32> to vector<1x4x16xf32>
    %493 = vector.shape_cast %415 : vector<4x16xf32> to vector<1x4x16xf32>
    %494 = vector.shape_cast %439 : vector<4x16xf32> to vector<1x4x16xf32>
    %495 = vector.shape_cast %463 : vector<4x16xf32> to vector<1x4x16xf32>
    %496 = vector.shape_cast %487 : vector<4x16xf32> to vector<1x4x16xf32>
    %497 = tpu.concatenate %489, %490, %491, %492, %493, %494, %495, %496 in 0 : vector<1x4x16xf32>, vector<1x4x16xf32>, vector<1x4x16xf32>, vector<1x4x16xf32>, vector<1x4x16xf32>, vector<1x4x16xf32>, vector<1x4x16xf32>, vector<1x4x16xf32> -> vector<8x4x16xf32>
    %498 = vector.shape_cast %488 : vector<4x16xf32> to vector<1x4x16xf32>
    %499 = vector.shape_cast %464 : vector<4x16xf32> to vector<1x4x16xf32>
    %500 = vector.shape_cast %440 : vector<4x16xf32> to vector<1x4x16xf32>
    %501 = vector.shape_cast %416 : vector<4x16xf32> to vector<1x4x16xf32>
    %502 = vector.shape_cast %392 : vector<4x16xf32> to vector<1x4x16xf32>
    %503 = vector.shape_cast %368 : vector<4x16xf32> to vector<1x4x16xf32>
    %504 = vector.shape_cast %344 : vector<4x16xf32> to vector<1x4x16xf32>
    %505 = vector.shape_cast %320 : vector<4x16xf32> to vector<1x4x16xf32>
    %506 = tpu.concatenate %498, %499, %500, %501, %502, %503, %504, %505 in 0 : vector<1x4x16xf32>, vector<1x4x16xf32>, vector<1x4x16xf32>, vector<1x4x16xf32>, vector<1x4x16xf32>, vector<1x4x16xf32>, vector<1x4x16xf32>, vector<1x4x16xf32> -> vector<8x4x16xf32>
    %507 = tpu.concatenate %497, %506 in 2 : vector<8x4x16xf32>, vector<8x4x16xf32> -> vector<8x4x32xf32>
    %508 = vector.shape_cast %507 : vector<8x4x32xf32> to vector<32x32xf32>
    %c144 = arith.constant 144 : index
    %c0_48 = arith.constant 0 : index
    %509 = vector.load %arg1[%c144, %c0_48] : memref<184x128xf32, #tpu.memory_space<vmem>>, vector<32x128xf32>
    %c176 = arith.constant 176 : index
    %c0_49 = arith.constant 0 : index
    %510 = vector.load %arg1[%c176, %c0_49] : memref<184x128xf32, #tpu.memory_space<vmem>>, vector<1x128xf32>
    %cst_50 = arith.constant dense<0.000000e+00> : vector<32x128xf32>
    %511 = tpu.matmul %508, %509, %cst_50 {dimension_numbers = #tpu.dot_dimension_numbers<[1], [0], [0], [1], [0, 0, 1, 1], [], []>} : vector<32x32xf32>, vector<32x128xf32>, vector<32x128xf32> -> vector<32x128xf32>
    %512 = vector.broadcast %510 : vector<1x128xf32> to vector<32x128xf32>
    %513 = arith.addf %511, %512 : vector<32x128xf32>
    %c0_51 = arith.constant 0 : index
    %c0_52 = arith.constant 0 : index
    %514 = vector.load %arg2[%c0_51, %c0_52] : memref<32x128xf32, #tpu.memory_space<vmem>>, vector<32x128xf32>
    tpu.vector_store %arg2[%c0_51, %c0_52], %513 {strides = array<i32>} : memref<32x128xf32, #tpu.memory_space<vmem>>, vector<32x128xf32>,
    return
  }
}

</mosaic_0001>

<llo_original>
// kernel: _forward_padded.1
$region0: #{_forward_padded.1}
  #allocation0 [shape = 'u32[]', space=smem, size = 0x4, offset = 0x4, fixed_abs, tag = 'smem constant byte address 0x4 - core index']
  #allocation1 [shape = 'u32[72,128]{1,0:T(1,128)}', space=vmem, size = 0x9000, scoped, tag = 'internal scratch']
  %s0 = inlined_call_operand.hbm [shape: f32[8,4,32], index: 0, kind: input, shape index: {}]
  %s1 = inlined_call_operand.hbm [shape: f32[184,128], index: 1, kind: input, shape index: {}]
  %s2 = inlined_call_operand.vmem [shape: f32[32,128], index: 2, kind: output, shape index: {}]
  %s3 = sld [smem:[#allocation0]]
  $region26: #{_forward_padded.1} parent=0
    _
  %s5 = ssub.s32 1, %s3
  %s6 = scalar_select 0, %s5, %s3
  $region1: #{_forward_padded.1} parent=0
    #allocation2 [shape = 'u8[16384]{0}', space=vmem, size = 0x4000, scoped, tag = 'input window, operand 0, single buffered']
    #allocation3 [shape = 's32[1]{0}', space=sflag, size = 0x4, scoped, tag = 'scoped memory for _forward_padded.1']
    #allocation4 [shape = 'u8[94208]{0}', space=vmem, size = 0x17000, scoped, tag = 'input window, operand 1, single buffered']
    #allocation5 [shape = 's32[1]{0}', space=sflag, size = 0x4, scoped, tag = 'scoped memory for _forward_padded.1']
    %7 = vsyncpa [#allocation3], 0
    %8 = vsyncpa [#allocation5], 0
    // Predicated region
    $region2: #{_forward_padded.1} parent=1 // pred_check
      _
    $region3: #{_forward_padded.1} parent=1 // pred_check_branch
      %10 = sbr.rel (0) target = $region5
    $region4: #{_forward_padded.1} parent=1 // pred_region
      %12 = vsyncadd [#allocation3], 0
      %s13 = sshll.u32 %s0, 4
      %s14 = int_to_ptr.hbm [resolvable:$true] %s13
      %s15 = sshll.u32 [#allocation2], 4
      %s16 = int_to_ptr.vmem [resolvable:$true] %s15
      %21 = dma.hbm_to_vmem [thread:$0]  %s14, 512, %s16, [#allocation3], 64, 64, 4
    $region5: #{_forward_padded.1} parent=1 // pred_fallthru
      _
    // Predicated region
    $region6: #{_forward_padded.1} parent=1 // pred_check
      _
    $region7: #{_forward_padded.1} parent=1 // pred_check_branch
      %23 = sbr.rel (0) target = $region9
    $region8: #{_forward_padded.1} parent=1 // pred_region
      %25 = vsyncadd [#allocation5], 0
      %s26 = sshll.u32 %s1, 4
      %s27 = int_to_ptr.hbm [resolvable:$true] %s26
      %s28 = sshll.u32 [#allocation4], 4
      %s29 = int_to_ptr.vmem [resolvable:$true] %s28
      %34 = dma.hbm_to_vmem [thread:$0]  %s27, 2944, %s29, [#allocation5], 128, 128, 8
    $region9: #{_forward_padded.1} parent=1 // pred_fallthru
      _
    // Predicated region
    $region10: #{_forward_padded.1} parent=1 // pred_check
      _
    $region11: #{_forward_padded.1} parent=1 // pred_check_branch
      %36 = sbr.rel (0) target = $region13
    $region12: #{_forward_padded.1} parent=1 // pred_region
      %38 = dma.done [#allocation3], 512
    $region13: #{_forward_padded.1} parent=1 // pred_fallthru
      _
    // Predicated region
    $region14: #{_forward_padded.1} parent=1 // pred_check
      _
    $region15: #{_forward_padded.1} parent=1 // pred_check_branch
      %40 = sbr.rel (0) target = $region17
    $region16: #{_forward_padded.1} parent=1 // pred_region
      %42 = dma.done [#allocation5], 2944
    $region17: #{_forward_padded.1} parent=1 // pred_fallthru
      _
    %v43 = vlaneseq
    %v44 = vshrl.u32 %v43, 7
    %v45 = vlaneseq
    %v46 = vand.u32 %v45, 127
    %vm47 = vcmp.lt.s32.totalorder %v44, 4
    %vm48 = vcmp.lt.s32.totalorder %v46, 16
    %vm49 = vmand %vm47, %vm48
    %vm50 = vcmp.ge.s32.totalorder %v44, 4
    %vm51 = vcmp.ge.s32.totalorder %v46, 16
    %vm52 = vmand %vm50, %vm51
    %vm53 = vmor %vm49, %vm52
    %v54 = vsel %vm53, 1, 0
    %v55 = vcvt.s32.f32 %v54
    %v56 = vld [vmem:[#allocation2] sm:$0xf]
    %v57 = vld [vmem:[#allocation2 + $0x4] sm:$0xf]
    %v58 = vld [vmem:[#allocation2 + $0x8] sm:$0xf]
    %v59 = vld [vmem:[#allocation2 + $0xc] sm:$0xf]
    %v60 = vld [vmem:[#allocation2 + $0x10] sm:$0xf]
    %v61 = vld [vmem:[#allocation2 + $0x14] sm:$0xf]
    %v62 = vld [vmem:[#allocation2 + $0x18] sm:$0xf]
    %v63 = vld [vmem:[#allocation2 + $0x1c] sm:$0xf]
    %v64 = vld [vmem:[#allocation4] sm:$0xff]
    %v65 = vld [vmem:[#allocation4 + $0x8] sm:$0xff]
    %v66 = vld [vmem:[#allocation4 + $0x10] sm:$0xff]
    %v67 = vld [vmem:[#allocation4 + $0x18] sm:$0xff]
    %v68 = vld [vmem:[#allocation4 + $0x20] sm:$0xff]
    %v69 = vld [vmem:[#allocation4 + $0x28] sm:$0xff]
    %v70 = vld [vmem:[#allocation4 + $0x30] sm:$0xff]
    %v71 = vld [vmem:[#allocation4 + $0x38] sm:$0xff]
    %v72 = vld [vmem:[#allocation4 + $0x40] sm:$0x1]
    %v73 = vperm.slane %v72, 0
    %82 = vst [vmem:[#allocation1] ss:$2 sm:$0xff] %v56
    %s83 = scalar_lea.vmem [#allocation1], 1
    %84 = vst [vmem:[%s83] ss:$2 sm:$0xff] %v57
    %s85 = scalar_lea.vmem [#allocation1], 16
    %86 = vst [vmem:[%s85] ss:$2 sm:$0xff] %v58
    %s87 = scalar_lea.vmem [#allocation1], 17
    %88 = vst [vmem:[%s87] ss:$2 sm:$0xff] %v59
    %s89 = scalar_lea.vmem [#allocation1], 32
    %90 = vst [vmem:[%s89] ss:$2 sm:$0xff] %v60
    %s91 = scalar_lea.vmem [#allocation1], 33
    %92 = vst [vmem:[%s91] ss:$2 sm:$0xff] %v61
    %s93 = scalar_lea.vmem [#allocation1], 48
    %94 = vst [vmem:[%s93] ss:$2 sm:$0xff] %v62
    %s95 = scalar_lea.vmem [#allocation1], 49
    %96 = vst [vmem:[%s95] ss:$2 sm:$0xff] %v63
    %v97 = vld.sshfl [vmem:[#allocation1] sm:$0xff pattern:$0x75316420]
    %v98 = vld.sshfl [vmem:[#allocation1 + $0x10] sm:$0xff pattern:$0x75316420]
    %v99 = vld.sshfl [vmem:[#allocation1 + $0x20] sm:$0xff pattern:$0x75316420]
    %v100 = vld.sshfl [vmem:[#allocation1 + $0x30] sm:$0xff pattern:$0x75316420]
    %vm101 = vcmask 261120
    %v102 = vsel %vm101, %v97, 0
    %v104 = vsel %vm101, %v98, 0
    %v106 = vsel %vm101, %v99, 0
    %v108 = vsel %vm101, %v100, 0
    %110 = vmatpush.msra.mxu0 0.0
    %111 = vmatpush.msra.mxu0 0.0
    %112 = vmatpush.msra.mxu0 0.0
    %113 = vmatpush.msra.mxu0 0.0
    %114 = vmatpush.msra.mxu0 0.0
    %115 = vmatpush.msra.mxu0 0.0
    %116 = vmatpush.msra.mxu0 0.0
    %117 = vmatpush.msra.mxu0 0.0
    %118 = vmatpush.msra.mxu0 0.0
    %119 = vmatpush.msra.mxu0 0.0
    %120 = vmatpush.msra.mxu0 0.0
    %121 = vmatpush.msra.mxu0 0.0
    %122 = vmatpush.msra.mxu0 %v67
    %123 = vmatpush.msra.mxu0 %v66
    %124 = vmatpush.msra.mxu0 %v65
    %125 = vmatpush.msra.mxu0 %v64
    %126 = vmatmul.f32.gmra.mxu0 %v102
    %v127 = vpop.f32.mrf.mxu0
    %v128 = vadd.f32 %v73, %v127
    %129 = vmatmul.f32.gmra.mxu0 %v104
    %v130 = vpop.f32.mrf.mxu0
    %v131 = vadd.f32 %v73, %v130
    %132 = vmatmul.f32.gmra.mxu0 %v106
    %v133 = vpop.f32.mrf.mxu0
    %v134 = vadd.f32 %v73, %v133
    %135 = vmatmul.f32.gmra.mxu0 %v108
    %v136 = vpop.f32.mrf.mxu0
    %v137 = vadd.f32 %v73, %v136
    %138 = vdwg.mxu0
    %v143 = vrot.slane %v128, 4
    %v144 = vrot.slane %v131, 4
    %v145 = vrot.slane %v134, 4
    %v146 = vrot.slane %v137, 4
    %s151 = scalar_lea.vmem [#allocation1], 1
    %152 = vst [vmem:[%s151] ss:$2 sm:$0xff] %v146
    %v153 = vld.sshfl [vmem:[#allocation1] sm:$0xff pattern:$0x75316420]
    %s154 = scalar_lea.vmem [#allocation1], 17
    %155 = vst [vmem:[%s154] ss:$2 sm:$0xff] %v137
    %v156 = vld.sshfl [vmem:[#allocation1 + $0x10] sm:$0xff pattern:$0x75316420]
    %s157 = scalar_lea.vmem [#allocation1], 33
    %158 = vst [vmem:[%s157] ss:$2 sm:$0xff] %v145
    %v159 = vld.sshfl [vmem:[#allocation1 + $0x20] sm:$0xff pattern:$0x75316420]
    %s160 = scalar_lea.vmem [#allocation1], 49
    %161 = vst [vmem:[%s160] ss:$2 sm:$0xff] %v134
    %v162 = vld.sshfl [vmem:[#allocation1 + $0x30] sm:$0xff pattern:$0x75316420]
    %163 = vst [vmem:[%s151] ss:$2 sm:$0xff] %v144
    %v164 = vld.sshfl [vmem:[#allocation1] sm:$0xff pattern:$0x75316420]
    %165 = vst [vmem:[%s154] ss:$2 sm:$0xff] %v131
    %v166 = vld.sshfl [vmem:[#allocation1 + $0x10] sm:$0xff pattern:$0x75316420]
    %167 = vst [vmem:[%s157] ss:$2 sm:$0xff] %v143
    %v168 = vld.sshfl [vmem:[#allocation1 + $0x20] sm:$0xff pattern:$0x75316420]
    %169 = vst [vmem:[%s160] ss:$2 sm:$0xff] %v128
    %v170 = vld.sshfl [vmem:[#allocation1 + $0x30] sm:$0xff pattern:$0x75316420]
    %171 = vrot.lane.b32.xlu0 %v153, 64
    %v172 = vpop.permute.xlu0 %171
    %173 = vrot.lane.b32.xlu0 %v156, 64
    %v174 = vpop.permute.xlu0 %173
    %175 = vrot.lane.b32.xlu0 %v159, 64
    %v176 = vpop.permute.xlu0 %175
    %177 = vrot.lane.b32.xlu0 %v162, 64
    %v178 = vpop.permute.xlu0 %177
    %179 = vrot.lane.b32.xlu0 %v164, 64
    %v180 = vpop.permute.xlu0 %179
    %181 = vrot.lane.b32.xlu0 %v166, 64
    %v182 = vpop.permute.xlu0 %181
    %183 = vrot.lane.b32.xlu0 %v168, 64
    %v184 = vpop.permute.xlu0 %183
    %185 = vrot.lane.b32.xlu0 %v170, 64
    %v186 = vpop.permute.xlu0 %185
    %vm195 = vcmask 1043456
    %v196 = vsel %vm195, %v128, %v172
    %v197 = vsel %vm195, %v143, %v174
    %v198 = vsel %vm195, %v131, %v176
    %v199 = vsel %vm195, %v144, %v178
    %v200 = vsel %vm195, %v134, %v180
    %v201 = vsel %vm195, %v145, %v182
    %v202 = vsel %vm195, %v137, %v184
    %v203 = vsel %vm195, %v146, %v186
    %v205 = vsel %vm101, 0.0, 0
    %207 = vmatpush.msra.mxu0 0.0
    %208 = vmatpush.msra.mxu0 0.0
    %209 = vmatpush.msra.mxu0 0.0
    %210 = vmatpush.msra.mxu0 0.0
    %211 = vmatpush.msra.mxu0 0.0
    %212 = vmatpush.msra.mxu0 0.0
    %213 = vmatpush.msra.mxu0 0.0
    %214 = vmatpush.msra.mxu0 0.0
    %215 = vmatpush.msra.mxu0 0.0
    %216 = vmatpush.msra.mxu0 0.0
    %217 = vmatpush.msra.mxu0 0.0
    %218 = vmatpush.msra.mxu0 0.0
    %219 = vmatpush.msra.mxu0 %v71
    %220 = vmatpush.msra.mxu0 %v70
    %221 = vmatpush.msra.mxu0 %v69
    %222 = vmatpush.msra.mxu0 %v68
    %223 = vmatmul.f32.gmra.mxu0 %v205
    %v224 = vpop.f32.mrf.mxu0
    %v225 = vadd.f32 %v196, %v224
    %226 = vdwg.mxu0
    %v227 = vxor.u32 %v225, 2147483648
    %v228 = vmul.f32 %v227, 1.442695
    %v229 = vpow.pop %v228
    %v230 = vadd.f32 %v229, 1.0
    %v231 = vrcp.pop %v230
    %v232 = vmul.f32 %v230, %v231
    %v233 = vsub.f32 1.0, %v232
    %v234 = vmul.f32 %v231, %v233
    %v235 = vadd.f32 %v231, %v234
    %vm236 = vweird.f32 %v230
    %vm237 = vweird.f32 %v231
    %vm238 = vmor %vm236, %vm237
    %v239 = vsel %vm238, %v231, %v235
    %v240 = vand.u32 2147483647, %v230
    %vm241 = vcmp.eq.f32.partialorder %v240, 8.507059e+37
    %v242 = vand.u32 %v230, 2147483648
    %v243 = vor.u32 1.1754944e-38, %v242
    %v244 = vsel %vm241, %v243, %v239
    %v245 = vmul.f32 1.0, %v244
    %v246 = vtanh.pop %v225
    %v247 = vmul.f32 %v245, 0.0
    %249 = vrot.lane.b32.xlu0 %v246, 80
    %v250 = vpop.permute.xlu0 %249
    %v252 = vmul.f32 %v245, %v250
    %254 = vrot.lane.b32.xlu0 %v252, 16
    %v255 = vpop.permute.xlu0 %254
    %v257 = vadd.f32 %v247, %v255
    %v258 = vtanh.pop %v257
    %260 = vrot.lane.b32.xlu0 %v258, 16
    %v261 = vpop.permute.xlu0 %260
    %v263 = vmul.f32 %v245, %v261
    %265 = vrot.lane.b32.xlu0 %v263, 96
    %v266 = vpop.permute.xlu0 %265
    %268 = vrot.lane.b32.xlu0 %v263, 112
    %v269 = vpop.permute.xlu0 %268
    %vm271 = vcmask 130048
    %v272 = vsel %vm271, %v266, %v269
    %v273 = vmul.f32 %v272, %v55
    %v275 = vsel %vm101, %v273, 0
    %277 = vmatpush.msra.mxu0 0.0
    %278 = vmatpush.msra.mxu0 0.0
    %279 = vmatpush.msra.mxu0 0.0
    %280 = vmatpush.msra.mxu0 0.0
    %281 = vmatpush.msra.mxu0 0.0
    %282 = vmatpush.msra.mxu0 0.0
    %283 = vmatpush.msra.mxu0 0.0
    %284 = vmatpush.msra.mxu0 0.0
    %285 = vmatpush.msra.mxu0 0.0
    %286 = vmatpush.msra.mxu0 0.0
    %287 = vmatpush.msra.mxu0 0.0
    %288 = vmatpush.msra.mxu0 0.0
    %289 = vmatpush.msra.mxu0 %v71
    %290 = vmatpush.msra.mxu0 %v70
    %291 = vmatpush.msra.mxu0 %v69
    %292 = vmatpush.msra.mxu0 %v68
    %293 = vmatmul.f32.gmra.mxu0 %v275
    %v294 = vpop.f32.mrf.mxu0
    %v295 = vadd.f32 %v197, %v294
    %296 = vdwg.mxu0
    %v297 = vxor.u32 %v295, 2147483648
    %v298 = vmul.f32 %v297, 1.442695
    %v299 = vpow.pop %v298
    %v300 = vadd.f32 %v299, 1.0
    %v301 = vrcp.pop %v300
    %v302 = vmul.f32 %v300, %v301
    %v303 = vsub.f32 1.0, %v302
    %v304 = vmul.f32 %v301, %v303
    %v305 = vadd.f32 %v301, %v304
    %vm306 = vweird.f32 %v300
    %vm307 = vweird.f32 %v301
    %vm308 = vmor %vm306, %vm307
    %v309 = vsel %vm308, %v301, %v305
    %v310 = vand.u32 2147483647, %v300
    %vm311 = vcmp.eq.f32.partialorder %v310, 8.507059e+37
    %v312 = vand.u32 %v300, 2147483648
    %v313 = vor.u32 1.1754944e-38, %v312
    %v314 = vsel %vm311, %v313, %v309
    %v315 = vmul.f32 1.0, %v314
    %v316 = vtanh.pop %v295
    %v317 = vmul.f32 %v315, %v257
    %319 = vrot.lane.b32.xlu0 %v316, 80
    %v320 = vpop.permute.xlu0 %319
    %v322 = vmul.f32 %v315, %v320
    %324 = vrot.lane.b32.xlu0 %v322, 16
    %v325 = vpop.permute.xlu0 %324
    %v327 = vadd.f32 %v317, %v325
    %v328 = vtanh.pop %v327
    %330 = vrot.lane.b32.xlu0 %v328, 16
    %v331 = vpop.permute.xlu0 %330
    %v333 = vmul.f32 %v315, %v331
    %335 = vrot.lane.b32.xlu0 %v333, 96
    %v336 = vpop.permute.xlu0 %335
    %338 = vrot.lane.b32.xlu0 %v333, 112
    %v339 = vpop.permute.xlu0 %338
    %v341 = vsel %vm271, %v336, %v339
    %v342 = vmul.f32 %v341, %v55
    %v344 = vsel %vm101, %v342, 0
    %346 = vmatpush.msra.mxu0 0.0
    %347 = vmatpush.msra.mxu0 0.0
    %348 = vmatpush.msra.mxu0 0.0
    %349 = vmatpush.msra.mxu0 0.0
    %350 = vmatpush.msra.mxu0 0.0
    %351 = vmatpush.msra.mxu0 0.0
    %352 = vmatpush.msra.mxu0 0.0
    %353 = vmatpush.msra.mxu0 0.0
    %354 = vmatpush.msra.mxu0 0.0
    %355 = vmatpush.msra.mxu0 0.0
    %356 = vmatpush.msra.mxu0 0.0
    %357 = vmatpush.msra.mxu0 0.0
    %358 = vmatpush.msra.mxu0 %v71
    %359 = vmatpush.msra.mxu0 %v70
    %360 = vmatpush.msra.mxu0 %v69
    %361 = vmatpush.msra.mxu0 %v68
    %362 = vmatmul.f32.gmra.mxu0 %v344
    %v363 = vpop.f32.mrf.mxu0
    %v364 = vadd.f32 %v198, %v363
    %365 = vdwg.mxu0
    %v366 = vxor.u32 %v364, 2147483648
    %v367 = vmul.f32 %v366, 1.442695
    %v368 = vpow.pop %v367
    %v369 = vadd.f32 %v368, 1.0
    %v370 = vrcp.pop %v369
    %v371 = vmul.f32 %v369, %v370
    %v372 = vsub.f32 1.0, %v371
    %v373 = vmul.f32 %v370, %v372
    %v374 = vadd.f32 %v370, %v373
    %vm375 = vweird.f32 %v369
    %vm376 = vweird.f32 %v370
    %vm377 = vmor %vm375, %vm376
    %v378 = vsel %vm377, %v370, %v374
    %v379 = vand.u32 2147483647, %v369
    %vm380 = vcmp.eq.f32.partialorder %v379, 8.507059e+37
    %v381 = vand.u32 %v369, 2147483648
    %v382 = vor.u32 1.1754944e-38, %v381
    %v383 = vsel %vm380, %v382, %v378
    %v384 = vmul.f32 1.0, %v383
    %v385 = vtanh.pop %v364
    %v386 = vmul.f32 %v384, %v327
    %388 = vrot.lane.b32.xlu0 %v385, 80
    %v389 = vpop.permute.xlu0 %388
    %v391 = vmul.f32 %v384, %v389
    %393 = vrot.lane.b32.xlu0 %v391, 16
    %v394 = vpop.permute.xlu0 %393
    %v396 = vadd.f32 %v386, %v394
    %v397 = vtanh.pop %v396
    %399 = vrot.lane.b32.xlu0 %v397, 16
    %v400 = vpop.permute.xlu0 %399
    %v402 = vmul.f32 %v384, %v400
    %404 = vrot.lane.b32.xlu0 %v402, 96
    %v405 = vpop.permute.xlu0 %404
    %407 = vrot.lane.b32.xlu0 %v402, 112
    %v408 = vpop.permute.xlu0 %407
    %v410 = vsel %vm271, %v405, %v408
    %v411 = vmul.f32 %v410, %v55
    %v413 = vsel %vm101, %v411, 0
    %415 = vmatpush.msra.mxu0 0.0
    %416 = vmatpush.msra.mxu0 0.0
    %417 = vmatpush.msra.mxu0 0.0
    %418 = vmatpush.msra.mxu0 0.0
    %419 = vmatpush.msra.mxu0 0.0
    %420 = vmatpush.msra.mxu0 0.0
    %421 = vmatpush.msra.mxu0 0.0
    %422 = vmatpush.msra.mxu0 0.0
    %423 = vmatpush.msra.mxu0 0.0
    %424 = vmatpush.msra.mxu0 0.0
    %425 = vmatpush.msra.mxu0 0.0
    %426 = vmatpush.msra.mxu0 0.0
    %427 = vmatpush.msra.mxu0 %v71
    %428 = vmatpush.msra.mxu0 %v70
    %429 = vmatpush.msra.mxu0 %v69
    %430 = vmatpush.msra.mxu0 %v68
    %431 = vmatmul.f32.gmra.mxu0 %v413
    %v432 = vpop.f32.mrf.mxu0
    %v433 = vadd.f32 %v199, %v432
    %434 = vdwg.mxu0
    %v435 = vxor.u32 %v433, 2147483648
    %v436 = vmul.f32 %v435, 1.442695
    %v437 = vpow.pop %v436
    %v438 = vadd.f32 %v437, 1.0
    %v439 = vrcp.pop %v438
    %v440 = vmul.f32 %v438, %v439
    %v441 = vsub.f32 1.0, %v440
    %v442 = vmul.f32 %v439, %v441
    %v443 = vadd.f32 %v439, %v442
    %vm444 = vweird.f32 %v438
    %vm445 = vweird.f32 %v439
    %vm446 = vmor %vm444, %vm445
    %v447 = vsel %vm446, %v439, %v443
    %v448 = vand.u32 2147483647, %v438
    %vm449 = vcmp.eq.f32.partialorder %v448, 8.507059e+37
    %v450 = vand.u32 %v438, 2147483648
    %v451 = vor.u32 1.1754944e-38, %v450
    %v452 = vsel %vm449, %v451, %v447
    %v453 = vmul.f32 1.0, %v452
    %v454 = vtanh.pop %v433
    %v455 = vmul.f32 %v453, %v396
    %457 = vrot.lane.b32.xlu0 %v454, 80
    %v458 = vpop.permute.xlu0 %457
    %v460 = vmul.f32 %v453, %v458
    %462 = vrot.lane.b32.xlu0 %v460, 16
    %v463 = vpop.permute.xlu0 %462
    %v465 = vadd.f32 %v455, %v463
    %v466 = vtanh.pop %v465
    %468 = vrot.lane.b32.xlu0 %v466, 16
    %v469 = vpop.permute.xlu0 %468
    %v471 = vmul.f32 %v453, %v469
    %473 = vrot.lane.b32.xlu0 %v471, 96
    %v474 = vpop.permute.xlu0 %473
    %476 = vrot.lane.b32.xlu0 %v471, 112
    %v477 = vpop.permute.xlu0 %476
    %v479 = vsel %vm271, %v474, %v477
    %v480 = vmul.f32 %v479, %v55
    %v482 = vsel %vm101, %v480, 0
    %484 = vmatpush.msra.mxu0 0.0
    %485 = vmatpush.msra.mxu0 0.0
    %486 = vmatpush.msra.mxu0 0.0
    %487 = vmatpush.msra.mxu0 0.0
    %488 = vmatpush.msra.mxu0 0.0
    %489 = vmatpush.msra.mxu0 0.0
    %490 = vmatpush.msra.mxu0 0.0
    %491 = vmatpush.msra.mxu0 0.0
    %492 = vmatpush.msra.mxu0 0.0
    %493 = vmatpush.msra.mxu0 0.0
    %494 = vmatpush.msra.mxu0 0.0
    %495 = vmatpush.msra.mxu0 0.0
    %496 = vmatpush.msra.mxu0 %v71
    %497 = vmatpush.msra.mxu0 %v70
    %498 = vmatpush.msra.mxu0 %v69
    %499 = vmatpush.msra.mxu0 %v68
    %500 = vmatmul.f32.gmra.mxu0 %v482
    %v501 = vpop.f32.mrf.mxu0
    %v502 = vadd.f32 %v200, %v501
    %503 = vdwg.mxu0
    %v504 = vxor.u32 %v502, 2147483648
    %v505 = vmul.f32 %v504, 1.442695
    %v506 = vpow.pop %v505
    %v507 = vadd.f32 %v506, 1.0
    %v508 = vrcp.pop %v507
    %v509 = vmul.f32 %v507, %v508
    %v510 = vsub.f32 1.0, %v509
    %v511 = vmul.f32 %v508, %v510
    %v512 = vadd.f32 %v508, %v511
    %vm513 = vweird.f32 %v507
    %vm514 = vweird.f32 %v508
    %vm515 = vmor %vm513, %vm514
    %v516 = vsel %vm515, %v508, %v512
    %v517 = vand.u32 2147483647, %v507
    %vm518 = vcmp.eq.f32.partialorder %v517, 8.507059e+37
    %v519 = vand.u32 %v507, 2147483648
    %v520 = vor.u32 1.1754944e-38, %v519
    %v521 = vsel %vm518, %v520, %v516
    %v522 = vmul.f32 1.0, %v521
    %v523 = vtanh.pop %v502
    %v524 = vmul.f32 %v522, %v465
    %526 = vrot.lane.b32.xlu0 %v523, 80
    %v527 = vpop.permute.xlu0 %526
    %v529 = vmul.f32 %v522, %v527
    %531 = vrot.lane.b32.xlu0 %v529, 16
    %v532 = vpop.permute.xlu0 %531
    %v534 = vadd.f32 %v524, %v532
    %v535 = vtanh.pop %v534
    %537 = vrot.lane.b32.xlu0 %v535, 16
    %v538 = vpop.permute.xlu0 %537
    %v540 = vmul.f32 %v522, %v538
    %542 = vrot.lane.b32.xlu0 %v540, 96
    %v543 = vpop.permute.xlu0 %542
    %545 = vrot.lane.b32.xlu0 %v540, 112
    %v546 = vpop.permute.xlu0 %545
    %v548 = vsel %vm271, %v543, %v546
    %v549 = vmul.f32 %v548, %v55
    %v551 = vsel %vm101, %v549, 0
    %553 = vmatpush.msra.mxu0 0.0
    %554 = vmatpush.msra.mxu0 0.0
    %555 = vmatpush.msra.mxu0 0.0
    %556 = vmatpush.msra.mxu0 0.0
    %557 = vmatpush.msra.mxu0 0.0
    %558 = vmatpush.msra.mxu0 0.0
    %559 = vmatpush.msra.mxu0 0.0
    %560 = vmatpush.msra.mxu0 0.0
    %561 = vmatpush.msra.mxu0 0.0
    %562 = vmatpush.msra.mxu0 0.0
    %563 = vmatpush.msra.mxu0 0.0
    %564 = vmatpush.msra.mxu0 0.0
    %565 = vmatpush.msra.mxu0 %v71
    %566 = vmatpush.msra.mxu0 %v70
    %567 = vmatpush.msra.mxu0 %v69
    %568 = vmatpush.msra.mxu0 %v68
    %569 = vmatmul.f32.gmra.mxu0 %v551
    %v570 = vpop.f32.mrf.mxu0
    %v571 = vadd.f32 %v201, %v570
    %572 = vdwg.mxu0
    %v573 = vxor.u32 %v571, 2147483648
    %v574 = vmul.f32 %v573, 1.442695
    %v575 = vpow.pop %v574
    %v576 = vadd.f32 %v575, 1.0
    %v577 = vrcp.pop %v576
    %v578 = vmul.f32 %v576, %v577
    %v579 = vsub.f32 1.0, %v578
    %v580 = vmul.f32 %v577, %v579
    %v581 = vadd.f32 %v577, %v580
    %vm582 = vweird.f32 %v576
    %vm583 = vweird.f32 %v577
    %vm584 = vmor %vm582, %vm583
    %v585 = vsel %vm584, %v577, %v581
    %v586 = vand.u32 2147483647, %v576
    %vm587 = vcmp.eq.f32.partialorder %v586, 8.507059e+37
    %v588 = vand.u32 %v576, 2147483648
    %v589 = vor.u32 1.1754944e-38, %v588
    %v590 = vsel %vm587, %v589, %v585
    %v591 = vmul.f32 1.0, %v590
    %v592 = vtanh.pop %v571
    %v593 = vmul.f32 %v591, %v534
    %595 = vrot.lane.b32.xlu0 %v592, 80
    %v596 = vpop.permute.xlu0 %595
    %v598 = vmul.f32 %v591, %v596
    %600 = vrot.lane.b32.xlu0 %v598, 16
    %v601 = vpop.permute.xlu0 %600
    %v603 = vadd.f32 %v593, %v601
    %v604 = vtanh.pop %v603
    %606 = vrot.lane.b32.xlu0 %v604, 16
    %v607 = vpop.permute.xlu0 %606
    %v609 = vmul.f32 %v591, %v607
    %611 = vrot.lane.b32.xlu0 %v609, 96
    %v612 = vpop.permute.xlu0 %611
    %614 = vrot.lane.b32.xlu0 %v609, 112
    %v615 = vpop.permute.xlu0 %614
    %v617 = vsel %vm271, %v612, %v615
    %v618 = vmul.f32 %v617, %v55
    %v620 = vsel %vm101, %v618, 0
    %622 = vmatpush.msra.mxu0 0.0
    %623 = vmatpush.msra.mxu0 0.0
    %624 = vmatpush.msra.mxu0 0.0
    %625 = vmatpush.msra.mxu0 0.0
    %626 = vmatpush.msra.mxu0 0.0
    %627 = vmatpush.msra.mxu0 0.0
    %628 = vmatpush.msra.mxu0 0.0
    %629 = vmatpush.msra.mxu0 0.0
    %630 = vmatpush.msra.mxu0 0.0
    %631 = vmatpush.msra.mxu0 0.0
    %632 = vmatpush.msra.mxu0 0.0
    %633 = vmatpush.msra.mxu0 0.0
    %634 = vmatpush.msra.mxu0 %v71
    %635 = vmatpush.msra.mxu0 %v70
    %636 = vmatpush.msra.mxu0 %v69
    %637 = vmatpush.msra.mxu0 %v68
    %638 = vmatmul.f32.gmra.mxu0 %v620
    %v639 = vpop.f32.mrf.mxu0
    %v640 = vadd.f32 %v202, %v639
    %641 = vdwg.mxu0
    %v642 = vxor.u32 %v640, 2147483648
    %v643 = vmul.f32 %v642, 1.442695
    %v644 = vpow.pop %v643
    %v645 = vadd.f32 %v644, 1.0
    %v646 = vrcp.pop %v645
    %v647 = vmul.f32 %v645, %v646
    %v648 = vsub.f32 1.0, %v647
    %v649 = vmul.f32 %v646, %v648
    %v650 = vadd.f32 %v646, %v649
    %vm651 = vweird.f32 %v645
    %vm652 = vweird.f32 %v646
    %vm653 = vmor %vm651, %vm652
    %v654 = vsel %vm653, %v646, %v650
    %v655 = vand.u32 2147483647, %v645
    %vm656 = vcmp.eq.f32.partialorder %v655, 8.507059e+37
    %v657 = vand.u32 %v645, 2147483648
    %v658 = vor.u32 1.1754944e-38, %v657
    %v659 = vsel %vm656, %v658, %v654
    %v660 = vmul.f32 1.0, %v659
    %v661 = vtanh.pop %v640
    %v662 = vmul.f32 %v660, %v603
    %664 = vrot.lane.b32.xlu0 %v661, 80
    %v665 = vpop.permute.xlu0 %664
    %v667 = vmul.f32 %v660, %v665
    %669 = vrot.lane.b32.xlu0 %v667, 16
    %v670 = vpop.permute.xlu0 %669
    %v672 = vadd.f32 %v662, %v670
    %v673 = vtanh.pop %v672
    %675 = vrot.lane.b32.xlu0 %v673, 16
    %v676 = vpop.permute.xlu0 %675
    %v678 = vmul.f32 %v660, %v676
    %680 = vrot.lane.b32.xlu0 %v678, 96
    %v681 = vpop.permute.xlu0 %680
    %683 = vrot.lane.b32.xlu0 %v678, 112
    %v684 = vpop.permute.xlu0 %683
    %v686 = vsel %vm271, %v681, %v684
    %v687 = vmul.f32 %v686, %v55
    %v689 = vsel %vm101, %v687, 0
    %691 = vmatpush.msra.mxu0 0.0
    %692 = vmatpush.msra.mxu0 0.0
    %693 = vmatpush.msra.mxu0 0.0
    %694 = vmatpush.msra.mxu0 0.0
    %695 = vmatpush.msra.mxu0 0.0
    %696 = vmatpush.msra.mxu0 0.0
    %697 = vmatpush.msra.mxu0 0.0
    %698 = vmatpush.msra.mxu0 0.0
    %699 = vmatpush.msra.mxu0 0.0
    %700 = vmatpush.msra.mxu0 0.0
    %701 = vmatpush.msra.mxu0 0.0
    %702 = vmatpush.msra.mxu0 0.0
    %703 = vmatpush.msra.mxu0 %v71
    %704 = vmatpush.msra.mxu0 %v70
    %705 = vmatpush.msra.mxu0 %v69
    %706 = vmatpush.msra.mxu0 %v68
    %707 = vmatmul.f32.gmra.mxu0 %v689
    %v708 = vpop.f32.mrf.mxu0
    %v709 = vadd.f32 %v203, %v708
    %710 = vdwg.mxu0
    %v711 = vxor.u32 %v709, 2147483648
    %v712 = vmul.f32 %v711, 1.442695
    %v713 = vpow.pop %v712
    %v714 = vadd.f32 %v713, 1.0
    %v715 = vrcp.pop %v714
    %v716 = vmul.f32 %v714, %v715
    %v717 = vsub.f32 1.0, %v716
    %v718 = vmul.f32 %v715, %v717
    %v719 = vadd.f32 %v715, %v718
    %vm720 = vweird.f32 %v714
    %vm721 = vweird.f32 %v715
    %vm722 = vmor %vm720, %vm721
    %v723 = vsel %vm722, %v715, %v719
    %v724 = vand.u32 2147483647, %v714
    %vm725 = vcmp.eq.f32.partialorder %v724, 8.507059e+37
    %v726 = vand.u32 %v714, 2147483648
    %v727 = vor.u32 1.1754944e-38, %v726
    %v728 = vsel %vm725, %v727, %v723
    %v729 = vmul.f32 1.0, %v728
    %v730 = vtanh.pop %v709
    %v731 = vmul.f32 %v729, %v672
    %733 = vrot.lane.b32.xlu0 %v730, 80
    %v734 = vpop.permute.xlu0 %733
    %v736 = vmul.f32 %v729, %v734
    %738 = vrot.lane.b32.xlu0 %v736, 16
    %v739 = vpop.permute.xlu0 %738
    %v741 = vadd.f32 %v731, %v739
    %v742 = vtanh.pop %v741
    %744 = vrot.lane.b32.xlu0 %v742, 16
    %v745 = vpop.permute.xlu0 %744
    %v747 = vmul.f32 %v729, %v745
    %749 = vrot.lane.b32.xlu0 %v747, 96
    %v750 = vpop.permute.xlu0 %749
    %v752 = vrot.slane %v747, 4
    %v753 = vrot.slane %v678, 4
    %v754 = vrot.slane %v609, 4
    %v755 = vrot.slane %v540, 4
    %v756 = vrot.slane %v471, 4
    %v757 = vrot.slane %v402, 4
    %v758 = vrot.slane %v333, 4
    %v759 = vrot.slane %v263, 4
    %760 = vrot.lane.b32.xlu0 %v752, 112
    %v761 = vpop.permute.xlu0 %760
    %762 = vrot.lane.b32.xlu0 %v753, 112
    %v763 = vpop.permute.xlu0 %762
    %764 = vrot.lane.b32.xlu0 %v754, 112
    %v765 = vpop.permute.xlu0 %764
    %766 = vrot.lane.b32.xlu0 %v755, 112
    %v767 = vpop.permute.xlu0 %766
    %768 = vrot.lane.b32.xlu0 %v756, 112
    %v769 = vpop.permute.xlu0 %768
    %770 = vrot.lane.b32.xlu0 %v757, 112
    %v771 = vpop.permute.xlu0 %770
    %772 = vrot.lane.b32.xlu0 %v758, 112
    %v773 = vpop.permute.xlu0 %772
    %774 = vrot.lane.b32.xlu0 %v759, 112
    %v775 = vpop.permute.xlu0 %774
    %v784 = vsel %vm271, %v266, %v761
    %v785 = vsel %vm271, %v336, %v763
    %v786 = vsel %vm271, %v405, %v765
    %v787 = vsel %vm271, %v474, %v767
    %v788 = vsel %vm271, %v543, %v769
    %v789 = vsel %vm271, %v612, %v771
    %v790 = vsel %vm271, %v681, %v773
    %v791 = vsel %vm271, %v750, %v775
    %v792 = vld [vmem:[#allocation4 + $0x48] sm:$0xff]
    %v793 = vld [vmem:[#allocation4 + $0x50] sm:$0xff]
    %v794 = vld [vmem:[#allocation4 + $0x58] sm:$0xff]
    %v795 = vld [vmem:[#allocation4 + $0x60] sm:$0xff]
    %v796 = vld [vmem:[#allocation4 + $0x68] sm:$0xff]
    %v797 = vld [vmem:[#allocation4 + $0x70] sm:$0xff]
    %v798 = vld [vmem:[#allocation4 + $0x78] sm:$0xff]
    %v799 = vld [vmem:[#allocation4 + $0x80] sm:$0xff]
    %v800 = vld [vmem:[#allocation4 + $0x88] sm:$0x1]
    %v801 = vperm.slane %v800, 0
    %810 = vst [vmem:[#allocation1] ss:$2 sm:$0xff] %v784
    %s811 = scalar_lea.vmem [#allocation1], 1
    %812 = vst [vmem:[%s811] ss:$2 sm:$0xff] %v785
    %s813 = scalar_lea.vmem [#allocation1], 16
    %814 = vst [vmem:[%s813] ss:$2 sm:$0xff] %v786
    %s815 = scalar_lea.vmem [#allocation1], 17
    %816 = vst [vmem:[%s815] ss:$2 sm:$0xff] %v787
    %s817 = scalar_lea.vmem [#allocation1], 32
    %818 = vst [vmem:[%s817] ss:$2 sm:$0xff] %v788
    %s819 = scalar_lea.vmem [#allocation1], 33
    %820 = vst [vmem:[%s819] ss:$2 sm:$0xff] %v789
    %s821 = scalar_lea.vmem [#allocation1], 48
    %822 = vst [vmem:[%s821] ss:$2 sm:$0xff] %v790
    %s823 = scalar_lea.vmem [#allocation1], 49
    %824 = vst [vmem:[%s823] ss:$2 sm:$0xff] %v791
    %v825 = vld.sshfl [vmem:[#allocation1] sm:$0xff pattern:$0x75316420]
    %v826 = vld.sshfl [vmem:[#allocation1 + $0x10] sm:$0xff pattern:$0x75316420]
    %v827 = vld.sshfl [vmem:[#allocation1 + $0x20] sm:$0xff pattern:$0x75316420]
    %v828 = vld.sshfl [vmem:[#allocation1 + $0x30] sm:$0xff pattern:$0x75316420]
    %v829 = vsel %vm101, %v825, 0
    %v831 = vsel %vm101, %v826, 0
    %v833 = vsel %vm101, %v827, 0
    %v835 = vsel %vm101, %v828, 0
    %837 = vmatpush.msra.mxu0 0.0
    %838 = vmatpush.msra.mxu0 0.0
    %839 = vmatpush.msra.mxu0 0.0
    %840 = vmatpush.msra.mxu0 0.0
    %841 = vmatpush.msra.mxu0 0.0
    %842 = vmatpush.msra.mxu0 0.0
    %843 = vmatpush.msra.mxu0 0.0
    %844 = vmatpush.msra.mxu0 0.0
    %845 = vmatpush.msra.mxu0 0.0
    %846 = vmatpush.msra.mxu0 0.0
    %847 = vmatpush.msra.mxu0 0.0
    %848 = vmatpush.msra.mxu0 0.0
    %849 = vmatpush.msra.mxu0 %v795
    %850 = vmatpush.msra.mxu0 %v794
    %851 = vmatpush.msra.mxu0 %v793
    %852 = vmatpush.msra.mxu0 %v792
    %853 = vmatmul.f32.gmra.mxu0 %v829
    %v854 = vpop.f32.mrf.mxu0
    %v855 = vadd.f32 %v801, %v854
    %856 = vmatmul.f32.gmra.mxu0 %v831
    %v857 = vpop.f32.mrf.mxu0
    %v858 = vadd.f32 %v801, %v857
    %859 = vmatmul.f32.gmra.mxu0 %v833
    %v860 = vpop.f32.mrf.mxu0
    %v861 = vadd.f32 %v801, %v860
    %862 = vmatmul.f32.gmra.mxu0 %v835
    %v863 = vpop.f32.mrf.mxu0
    %v864 = vadd.f32 %v801, %v863
    %865 = vdwg.mxu0
    %v870 = vrot.slane %v855, 4
    %v871 = vrot.slane %v858, 4
    %v872 = vrot.slane %v861, 4
    %v873 = vrot.slane %v864, 4
    %s878 = scalar_lea.vmem [#allocation1], 1
    %879 = vst [vmem:[%s878] ss:$2 sm:$0xff] %v873
    %v880 = vld.sshfl [vmem:[#allocation1] sm:$0xff pattern:$0x75316420]
    %s881 = scalar_lea.vmem [#allocation1], 17
    %882 = vst [vmem:[%s881] ss:$2 sm:$0xff] %v864
    %v883 = vld.sshfl [vmem:[#allocation1 + $0x10] sm:$0xff pattern:$0x75316420]
    %s884 = scalar_lea.vmem [#allocation1], 33
    %885 = vst [vmem:[%s884] ss:$2 sm:$0xff] %v872
    %v886 = vld.sshfl [vmem:[#allocation1 + $0x20] sm:$0xff pattern:$0x75316420]
    %s887 = scalar_lea.vmem [#allocation1], 49
    %888 = vst [vmem:[%s887] ss:$2 sm:$0xff] %v861
    %v889 = vld.sshfl [vmem:[#allocation1 + $0x30] sm:$0xff pattern:$0x75316420]
    %890 = vst [vmem:[%s878] ss:$2 sm:$0xff] %v871
    %v891 = vld.sshfl [vmem:[#allocation1] sm:$0xff pattern:$0x75316420]
    %892 = vst [vmem:[%s881] ss:$2 sm:$0xff] %v858
    %v893 = vld.sshfl [vmem:[#allocation1 + $0x10] sm:$0xff pattern:$0x75316420]
    %894 = vst [vmem:[%s884] ss:$2 sm:$0xff] %v870
    %v895 = vld.sshfl [vmem:[#allocation1 + $0x20] sm:$0xff pattern:$0x75316420]
    %896 = vst [vmem:[%s887] ss:$2 sm:$0xff] %v855
    %v897 = vld.sshfl [vmem:[#allocation1 + $0x30] sm:$0xff pattern:$0x75316420]
    %898 = vrot.lane.b32.xlu0 %v880, 64
    %v899 = vpop.permute.xlu0 %898
    %900 = vrot.lane.b32.xlu0 %v883, 64
    %v901 = vpop.permute.xlu0 %900
    %902 = vrot.lane.b32.xlu0 %v886, 64
    %v903 = vpop.permute.xlu0 %902
    %904 = vrot.lane.b32.xlu0 %v889, 64
    %v905 = vpop.permute.xlu0 %904
    %906 = vrot.lane.b32.xlu0 %v891, 64
    %v907 = vpop.permute.xlu0 %906
    %908 = vrot.lane.b32.xlu0 %v893, 64
    %v909 = vpop.permute.xlu0 %908
    %910 = vrot.lane.b32.xlu0 %v895, 64
    %v911 = vpop.permute.xlu0 %910
    %912 = vrot.lane.b32.xlu0 %v897, 64
    %v913 = vpop.permute.xlu0 %912
    %v922 = vsel %vm195, %v855, %v899
    %v923 = vsel %vm195, %v870, %v901
    %v924 = vsel %vm195, %v858, %v903
    %v925 = vsel %vm195, %v871, %v905
    %v926 = vsel %vm195, %v861, %v907
    %v927 = vsel %vm195, %v872, %v909
    %v928 = vsel %vm195, %v864, %v911
    %v929 = vsel %vm195, %v873, %v913
    %930 = vmatpush.msra.mxu0 0.0
    %931 = vmatpush.msra.mxu0 0.0
    %932 = vmatpush.msra.mxu0 0.0
    %933 = vmatpush.msra.mxu0 0.0
    %934 = vmatpush.msra.mxu0 0.0
    %935 = vmatpush.msra.mxu0 0.0
    %936 = vmatpush.msra.mxu0 0.0
    %937 = vmatpush.msra.mxu0 0.0
    %938 = vmatpush.msra.mxu0 0.0
    %939 = vmatpush.msra.mxu0 0.0
    %940 = vmatpush.msra.mxu0 0.0
    %941 = vmatpush.msra.mxu0 0.0
    %942 = vmatpush.msra.mxu0 %v799
    %943 = vmatpush.msra.mxu0 %v798
    %944 = vmatpush.msra.mxu0 %v797
    %945 = vmatpush.msra.mxu0 %v796
    %946 = vmatmul.f32.gmra.mxu0 %v205
    %v947 = vpop.f32.mrf.mxu0
    %v948 = vadd.f32 %v922, %v947
    %949 = vdwg.mxu0
    %v950 = vxor.u32 %v948, 2147483648
    %v951 = vmul.f32 %v950, 1.442695
    %v952 = vpow.pop %v951
    %v953 = vadd.f32 %v952, 1.0
    %v954 = vrcp.pop %v953
    %v955 = vmul.f32 %v953, %v954
    %v956 = vsub.f32 1.0, %v955
    %v957 = vmul.f32 %v954, %v956
    %v958 = vadd.f32 %v954, %v957
    %vm959 = vweird.f32 %v953
    %vm960 = vweird.f32 %v954
    %vm961 = vmor %vm959, %vm960
    %v962 = vsel %vm961, %v954, %v958
    %v963 = vand.u32 2147483647, %v953
    %vm964 = vcmp.eq.f32.partialorder %v963, 8.507059e+37
    %v965 = vand.u32 %v953, 2147483648
    %v966 = vor.u32 1.1754944e-38, %v965
    %v967 = vsel %vm964, %v966, %v962
    %v968 = vmul.f32 1.0, %v967
    %v969 = vtanh.pop %v948
    %v970 = vmul.f32 %v968, 0.0
    %972 = vrot.lane.b32.xlu0 %v969, 80
    %v973 = vpop.permute.xlu0 %972
    %v975 = vmul.f32 %v968, %v973
    %977 = vrot.lane.b32.xlu0 %v975, 16
    %v978 = vpop.permute.xlu0 %977
    %v980 = vadd.f32 %v970, %v978
    %v981 = vtanh.pop %v980
    %983 = vrot.lane.b32.xlu0 %v981, 16
    %v984 = vpop.permute.xlu0 %983
    %v986 = vmul.f32 %v968, %v984
    %988 = vrot.lane.b32.xlu0 %v986, 96
    %v989 = vpop.permute.xlu0 %988
    %991 = vrot.lane.b32.xlu0 %v986, 112
    %v992 = vpop.permute.xlu0 %991
    %v994 = vsel %vm271, %v989, %v992
    %v995 = vmul.f32 %v994, %v55
    %v997 = vsel %vm101, %v995, 0
    %999 = vmatpush.msra.mxu0 0.0
    %1000 = vmatpush.msra.mxu0 0.0
    %1001 = vmatpush.msra.mxu0 0.0
    %1002 = vmatpush.msra.mxu0 0.0
    %1003 = vmatpush.msra.mxu0 0.0
    %1004 = vmatpush.msra.mxu0 0.0
    %1005 = vmatpush.msra.mxu0 0.0
    %1006 = vmatpush.msra.mxu0 0.0
    %1007 = vmatpush.msra.mxu0 0.0
    %1008 = vmatpush.msra.mxu0 0.0
    %1009 = vmatpush.msra.mxu0 0.0
    %1010 = vmatpush.msra.mxu0 0.0
    %1011 = vmatpush.msra.mxu0 %v799
    %1012 = vmatpush.msra.mxu0 %v798
    %1013 = vmatpush.msra.mxu0 %v797
    %1014 = vmatpush.msra.mxu0 %v796
    %1015 = vmatmul.f32.gmra.mxu0 %v997
    %v1016 = vpop.f32.mrf.mxu0
    %v1017 = vadd.f32 %v923, %v1016
    %1018 = vdwg.mxu0
    %v1019 = vxor.u32 %v1017, 2147483648
    %v1020 = vmul.f32 %v1019, 1.442695
    %v1021 = vpow.pop %v1020
    %v1022 = vadd.f32 %v1021, 1.0
    %v1023 = vrcp.pop %v1022
    %v1024 = vmul.f32 %v1022, %v1023
    %v1025 = vsub.f32 1.0, %v1024
    %v1026 = vmul.f32 %v1023, %v1025
    %v1027 = vadd.f32 %v1023, %v1026
    %vm1028 = vweird.f32 %v1022
    %vm1029 = vweird.f32 %v1023
    %vm1030 = vmor %vm1028, %vm1029
    %v1031 = vsel %vm1030, %v1023, %v1027
    %v1032 = vand.u32 2147483647, %v1022
    %vm1033 = vcmp.eq.f32.partialorder %v1032, 8.507059e+37
    %v1034 = vand.u32 %v1022, 2147483648
    %v1035 = vor.u32 1.1754944e-38, %v1034
    %v1036 = vsel %vm1033, %v1035, %v1031
    %v1037 = vmul.f32 1.0, %v1036
    %v1038 = vtanh.pop %v1017
    %v1039 = vmul.f32 %v1037, %v980
    %1041 = vrot.lane.b32.xlu0 %v1038, 80
    %v1042 = vpop.permute.xlu0 %1041
    %v1044 = vmul.f32 %v1037, %v1042
    %1046 = vrot.lane.b32.xlu0 %v1044, 16
    %v1047 = vpop.permute.xlu0 %1046
    %v1049 = vadd.f32 %v1039, %v1047
    %v1050 = vtanh.pop %v1049
    %1052 = vrot.lane.b32.xlu0 %v1050, 16
    %v1053 = vpop.permute.xlu0 %1052
    %v1055 = vmul.f32 %v1037, %v1053
    %1057 = vrot.lane.b32.xlu0 %v1055, 96
    %v1058 = vpop.permute.xlu0 %1057
    %1060 = vrot.lane.b32.xlu0 %v1055, 112
    %v1061 = vpop.permute.xlu0 %1060
    %v1063 = vsel %vm271, %v1058, %v1061
    %v1064 = vmul.f32 %v1063, %v55
    %v1066 = vsel %vm101, %v1064, 0
    %1068 = vmatpush.msra.mxu0 0.0
    %1069 = vmatpush.msra.mxu0 0.0
    %1070 = vmatpush.msra.mxu0 0.0
    %1071 = vmatpush.msra.mxu0 0.0
    %1072 = vmatpush.msra.mxu0 0.0
    %1073 = vmatpush.msra.mxu0 0.0
    %1074 = vmatpush.msra.mxu0 0.0
    %1075 = vmatpush.msra.mxu0 0.0
    %1076 = vmatpush.msra.mxu0 0.0
    %1077 = vmatpush.msra.mxu0 0.0
    %1078 = vmatpush.msra.mxu0 0.0
    %1079 = vmatpush.msra.mxu0 0.0
    %1080 = vmatpush.msra.mxu0 %v799
    %1081 = vmatpush.msra.mxu0 %v798
    %1082 = vmatpush.msra.mxu0 %v797
    %1083 = vmatpush.msra.mxu0 %v796
    %1084 = vmatmul.f32.gmra.mxu0 %v1066
    %v1085 = vpop.f32.mrf.mxu0
    %v1086 = vadd.f32 %v924, %v1085
    %1087 = vdwg.mxu0
    %v1088 = vxor.u32 %v1086, 2147483648
    %v1089 = vmul.f32 %v1088, 1.442695
    %v1090 = vpow.pop %v1089
    %v1091 = vadd.f32 %v1090, 1.0
    %v1092 = vrcp.pop %v1091
    %v1093 = vmul.f32 %v1091, %v1092
    %v1094 = vsub.f32 1.0, %v1093
    %v1095 = vmul.f32 %v1092, %v1094
    %v1096 = vadd.f32 %v1092, %v1095
    %vm1097 = vweird.f32 %v1091
    %vm1098 = vweird.f32 %v1092
    %vm1099 = vmor %vm1097, %vm1098
    %v1100 = vsel %vm1099, %v1092, %v1096
    %v1101 = vand.u32 2147483647, %v1091
    %vm1102 = vcmp.eq.f32.partialorder %v1101, 8.507059e+37
    %v1103 = vand.u32 %v1091, 2147483648
    %v1104 = vor.u32 1.1754944e-38, %v1103
    %v1105 = vsel %vm1102, %v1104, %v1100
    %v1106 = vmul.f32 1.0, %v1105
    %v1107 = vtanh.pop %v1086
    %v1108 = vmul.f32 %v1106, %v1049
    %1110 = vrot.lane.b32.xlu0 %v1107, 80
    %v1111 = vpop.permute.xlu0 %1110
    %v1113 = vmul.f32 %v1106, %v1111
    %1115 = vrot.lane.b32.xlu0 %v1113, 16
    %v1116 = vpop.permute.xlu0 %1115
    %v1118 = vadd.f32 %v1108, %v1116
    %v1119 = vtanh.pop %v1118
    %1121 = vrot.lane.b32.xlu0 %v1119, 16
    %v1122 = vpop.permute.xlu0 %1121
    %v1124 = vmul.f32 %v1106, %v1122
    %1126 = vrot.lane.b32.xlu0 %v1124, 96
    %v1127 = vpop.permute.xlu0 %1126
    %1129 = vrot.lane.b32.xlu0 %v1124, 112
    %v1130 = vpop.permute.xlu0 %1129
    %v1132 = vsel %vm271, %v1127, %v1130
    %v1133 = vmul.f32 %v1132, %v55
    %v1135 = vsel %vm101, %v1133, 0
    %1137 = vmatpush.msra.mxu0 0.0
    %1138 = vmatpush.msra.mxu0 0.0
    %1139 = vmatpush.msra.mxu0 0.0
    %1140 = vmatpush.msra.mxu0 0.0
    %1141 = vmatpush.msra.mxu0 0.0
    %1142 = vmatpush.msra.mxu0 0.0
    %1143 = vmatpush.msra.mxu0 0.0
    %1144 = vmatpush.msra.mxu0 0.0
    %1145 = vmatpush.msra.mxu0 0.0
    %1146 = vmatpush.msra.mxu0 0.0
    %1147 = vmatpush.msra.mxu0 0.0
    %1148 = vmatpush.msra.mxu0 0.0
    %1149 = vmatpush.msra.mxu0 %v799
    %1150 = vmatpush.msra.mxu0 %v798
    %1151 = vmatpush.msra.mxu0 %v797
    %1152 = vmatpush.msra.mxu0 %v796
    %1153 = vmatmul.f32.gmra.mxu0 %v1135
    %v1154 = vpop.f32.mrf.mxu0
    %v1155 = vadd.f32 %v925, %v1154
    %1156 = vdwg.mxu0
    %v1157 = vxor.u32 %v1155, 2147483648
    %v1158 = vmul.f32 %v1157, 1.442695
    %v1159 = vpow.pop %v1158
    %v1160 = vadd.f32 %v1159, 1.0
    %v1161 = vrcp.pop %v1160
    %v1162 = vmul.f32 %v1160, %v1161
    %v1163 = vsub.f32 1.0, %v1162
    %v1164 = vmul.f32 %v1161, %v1163
    %v1165 = vadd.f32 %v1161, %v1164
    %vm1166 = vweird.f32 %v1160
    %vm1167 = vweird.f32 %v1161
    %vm1168 = vmor %vm1166, %vm1167
    %v1169 = vsel %vm1168, %v1161, %v1165
    %v1170 = vand.u32 2147483647, %v1160
    %vm1171 = vcmp.eq.f32.partialorder %v1170, 8.507059e+37
    %v1172 = vand.u32 %v1160, 2147483648
    %v1173 = vor.u32 1.1754944e-38, %v1172
    %v1174 = vsel %vm1171, %v1173, %v1169
    %v1175 = vmul.f32 1.0, %v1174
    %v1176 = vtanh.pop %v1155
    %v1177 = vmul.f32 %v1175, %v1118
    %1179 = vrot.lane.b32.xlu0 %v1176, 80
    %v1180 = vpop.permute.xlu0 %1179
    %v1182 = vmul.f32 %v1175, %v1180
    %1184 = vrot.lane.b32.xlu0 %v1182, 16
    %v1185 = vpop.permute.xlu0 %1184
    %v1187 = vadd.f32 %v1177, %v1185
    %v1188 = vtanh.pop %v1187
    %1190 = vrot.lane.b32.xlu0 %v1188, 16
    %v1191 = vpop.permute.xlu0 %1190
    %v1193 = vmul.f32 %v1175, %v1191
    %1195 = vrot.lane.b32.xlu0 %v1193, 96
    %v1196 = vpop.permute.xlu0 %1195
    %1198 = vrot.lane.b32.xlu0 %v1193, 112
    %v1199 = vpop.permute.xlu0 %1198
    %v1201 = vsel %vm271, %v1196, %v1199
    %v1202 = vmul.f32 %v1201, %v55
    %v1204 = vsel %vm101, %v1202, 0
    %1206 = vmatpush.msra.mxu0 0.0
    %1207 = vmatpush.msra.mxu0 0.0
    %1208 = vmatpush.msra.mxu0 0.0
    %1209 = vmatpush.msra.mxu0 0.0
    %1210 = vmatpush.msra.mxu0 0.0
    %1211 = vmatpush.msra.mxu0 0.0
    %1212 = vmatpush.msra.mxu0 0.0
    %1213 = vmatpush.msra.mxu0 0.0
    %1214 = vmatpush.msra.mxu0 0.0
    %1215 = vmatpush.msra.mxu0 0.0
    %1216 = vmatpush.msra.mxu0 0.0
    %1217 = vmatpush.msra.mxu0 0.0
    %1218 = vmatpush.msra.mxu0 %v799
    %1219 = vmatpush.msra.mxu0 %v798
    %1220 = vmatpush.msra.mxu0 %v797
    %1221 = vmatpush.msra.mxu0 %v796
    %1222 = vmatmul.f32.gmra.mxu0 %v1204
    %v1223 = vpop.f32.mrf.mxu0
    %v1224 = vadd.f32 %v926, %v1223
    %1225 = vdwg.mxu0
    %v1226 = vxor.u32 %v1224, 2147483648
    %v1227 = vmul.f32 %v1226, 1.442695
    %v1228 = vpow.pop %v1227
    %v1229 = vadd.f32 %v1228, 1.0
    %v1230 = vrcp.pop %v1229
    %v1231 = vmul.f32 %v1229, %v1230
    %v1232 = vsub.f32 1.0, %v1231
    %v1233 = vmul.f32 %v1230, %v1232
    %v1234 = vadd.f32 %v1230, %v1233
    %vm1235 = vweird.f32 %v1229
    %vm1236 = vweird.f32 %v1230
    %vm1237 = vmor %vm1235, %vm1236
    %v1238 = vsel %vm1237, %v1230, %v1234
    %v1239 = vand.u32 2147483647, %v1229
    %vm1240 = vcmp.eq.f32.partialorder %v1239, 8.507059e+37
    %v1241 = vand.u32 %v1229, 2147483648
    %v1242 = vor.u32 1.1754944e-38, %v1241
    %v1243 = vsel %vm1240, %v1242, %v1238
    %v1244 = vmul.f32 1.0, %v1243
    %v1245 = vtanh.pop %v1224
    %v1246 = vmul.f32 %v1244, %v1187
    %1248 = vrot.lane.b32.xlu0 %v1245, 80
    %v1249 = vpop.permute.xlu0 %1248
    %v1251 = vmul.f32 %v1244, %v1249
    %1253 = vrot.lane.b32.xlu0 %v1251, 16
    %v1254 = vpop.permute.xlu0 %1253
    %v1256 = vadd.f32 %v1246, %v1254
    %v1257 = vtanh.pop %v1256
    %1259 = vrot.lane.b32.xlu0 %v1257, 16
    %v1260 = vpop.permute.xlu0 %1259
    %v1262 = vmul.f32 %v1244, %v1260
    %1264 = vrot.lane.b32.xlu0 %v1262, 96
    %v1265 = vpop.permute.xlu0 %1264
    %1267 = vrot.lane.b32.xlu0 %v1262, 112
    %v1268 = vpop.permute.xlu0 %1267
    %v1270 = vsel %vm271, %v1265, %v1268
    %v1271 = vmul.f32 %v1270, %v55
    %v1273 = vsel %vm101, %v1271, 0
    %1275 = vmatpush.msra.mxu0 0.0
    %1276 = vmatpush.msra.mxu0 0.0
    %1277 = vmatpush.msra.mxu0 0.0
    %1278 = vmatpush.msra.mxu0 0.0
    %1279 = vmatpush.msra.mxu0 0.0
    %1280 = vmatpush.msra.mxu0 0.0
    %1281 = vmatpush.msra.mxu0 0.0
    %1282 = vmatpush.msra.mxu0 0.0
    %1283 = vmatpush.msra.mxu0 0.0
    %1284 = vmatpush.msra.mxu0 0.0
    %1285 = vmatpush.msra.mxu0 0.0
    %1286 = vmatpush.msra.mxu0 0.0
    %1287 = vmatpush.msra.mxu0 %v799
    %1288 = vmatpush.msra.mxu0 %v798
    %1289 = vmatpush.msra.mxu0 %v797
    %1290 = vmatpush.msra.mxu0 %v796
    %1291 = vmatmul.f32.gmra.mxu0 %v1273
    %v1292 = vpop.f32.mrf.mxu0
    %v1293 = vadd.f32 %v927, %v1292
    %1294 = vdwg.mxu0
    %v1295 = vxor.u32 %v1293, 2147483648
    %v1296 = vmul.f32 %v1295, 1.442695
    %v1297 = vpow.pop %v1296
    %v1298 = vadd.f32 %v1297, 1.0
    %v1299 = vrcp.pop %v1298
    %v1300 = vmul.f32 %v1298, %v1299
    %v1301 = vsub.f32 1.0, %v1300
    %v1302 = vmul.f32 %v1299, %v1301
    %v1303 = vadd.f32 %v1299, %v1302
    %vm1304 = vweird.f32 %v1298
    %vm1305 = vweird.f32 %v1299
    %vm1306 = vmor %vm1304, %vm1305
    %v1307 = vsel %vm1306, %v1299, %v1303
    %v1308 = vand.u32 2147483647, %v1298
    %vm1309 = vcmp.eq.f32.partialorder %v1308, 8.507059e+37
    %v1310 = vand.u32 %v1298, 2147483648
    %v1311 = vor.u32 1.1754944e-38, %v1310
    %v1312 = vsel %vm1309, %v1311, %v1307
    %v1313 = vmul.f32 1.0, %v1312
    %v1314 = vtanh.pop %v1293
    %v1315 = vmul.f32 %v1313, %v1256
    %1317 = vrot.lane.b32.xlu0 %v1314, 80
    %v1318 = vpop.permute.xlu0 %1317
    %v1320 = vmul.f32 %v1313, %v1318
    %1322 = vrot.lane.b32.xlu0 %v1320, 16
    %v1323 = vpop.permute.xlu0 %1322
    %v1325 = vadd.f32 %v1315, %v1323
    %v1326 = vtanh.pop %v1325
    %1328 = vrot.lane.b32.xlu0 %v1326, 16
    %v1329 = vpop.permute.xlu0 %1328
    %v1331 = vmul.f32 %v1313, %v1329
    %1333 = vrot.lane.b32.xlu0 %v1331, 96
    %v1334 = vpop.permute.xlu0 %1333
    %1336 = vrot.lane.b32.xlu0 %v1331, 112
    %v1337 = vpop.permute.xlu0 %1336
    %v1339 = vsel %vm271, %v1334, %v1337
    %v1340 = vmul.f32 %v1339, %v55
    %v1342 = vsel %vm101, %v1340, 0
    %1344 = vmatpush.msra.mxu0 0.0
    %1345 = vmatpush.msra.mxu0 0.0
    %1346 = vmatpush.msra.mxu0 0.0
    %1347 = vmatpush.msra.mxu0 0.0
    %1348 = vmatpush.msra.mxu0 0.0
    %1349 = vmatpush.msra.mxu0 0.0
    %1350 = vmatpush.msra.mxu0 0.0
    %1351 = vmatpush.msra.mxu0 0.0
    %1352 = vmatpush.msra.mxu0 0.0
    %1353 = vmatpush.msra.mxu0 0.0
    %1354 = vmatpush.msra.mxu0 0.0
    %1355 = vmatpush.msra.mxu0 0.0
    %1356 = vmatpush.msra.mxu0 %v799
    %1357 = vmatpush.msra.mxu0 %v798
    %1358 = vmatpush.msra.mxu0 %v797
    %1359 = vmatpush.msra.mxu0 %v796
    %1360 = vmatmul.f32.gmra.mxu0 %v1342
    %v1361 = vpop.f32.mrf.mxu0
    %v1362 = vadd.f32 %v928, %v1361
    %1363 = vdwg.mxu0
    %v1364 = vxor.u32 %v1362, 2147483648
    %v1365 = vmul.f32 %v1364, 1.442695
    %v1366 = vpow.pop %v1365
    %v1367 = vadd.f32 %v1366, 1.0
    %v1368 = vrcp.pop %v1367
    %v1369 = vmul.f32 %v1367, %v1368
    %v1370 = vsub.f32 1.0, %v1369
    %v1371 = vmul.f32 %v1368, %v1370
    %v1372 = vadd.f32 %v1368, %v1371
    %vm1373 = vweird.f32 %v1367
    %vm1374 = vweird.f32 %v1368
    %vm1375 = vmor %vm1373, %vm1374
    %v1376 = vsel %vm1375, %v1368, %v1372
    %v1377 = vand.u32 2147483647, %v1367
    %vm1378 = vcmp.eq.f32.partialorder %v1377, 8.507059e+37
    %v1379 = vand.u32 %v1367, 2147483648
    %v1380 = vor.u32 1.1754944e-38, %v1379
    %v1381 = vsel %vm1378, %v1380, %v1376
    %v1382 = vmul.f32 1.0, %v1381
    %v1383 = vtanh.pop %v1362
    %v1384 = vmul.f32 %v1382, %v1325
    %1386 = vrot.lane.b32.xlu0 %v1383, 80
    %v1387 = vpop.permute.xlu0 %1386
    %v1389 = vmul.f32 %v1382, %v1387
    %1391 = vrot.lane.b32.xlu0 %v1389, 16
    %v1392 = vpop.permute.xlu0 %1391
    %v1394 = vadd.f32 %v1384, %v1392
    %v1395 = vtanh.pop %v1394
    %1397 = vrot.lane.b32.xlu0 %v1395, 16
    %v1398 = vpop.permute.xlu0 %1397
    %v1400 = vmul.f32 %v1382, %v1398
    %1402 = vrot.lane.b32.xlu0 %v1400, 96
    %v1403 = vpop.permute.xlu0 %1402
    %1405 = vrot.lane.b32.xlu0 %v1400, 112
    %v1406 = vpop.permute.xlu0 %1405
    %v1408 = vsel %vm271, %v1403, %v1406
    %v1409 = vmul.f32 %v1408, %v55
    %v1411 = vsel %vm101, %v1409, 0
    %1413 = vmatpush.msra.mxu0 0.0
    %1414 = vmatpush.msra.mxu0 0.0
    %1415 = vmatpush.msra.mxu0 0.0
    %1416 = vmatpush.msra.mxu0 0.0
    %1417 = vmatpush.msra.mxu0 0.0
    %1418 = vmatpush.msra.mxu0 0.0
    %1419 = vmatpush.msra.mxu0 0.0
    %1420 = vmatpush.msra.mxu0 0.0
    %1421 = vmatpush.msra.mxu0 0.0
    %1422 = vmatpush.msra.mxu0 0.0
    %1423 = vmatpush.msra.mxu0 0.0
    %1424 = vmatpush.msra.mxu0 0.0
    %1425 = vmatpush.msra.mxu0 %v799
    %1426 = vmatpush.msra.mxu0 %v798
    %1427 = vmatpush.msra.mxu0 %v797
    %1428 = vmatpush.msra.mxu0 %v796
    %1429 = vmatmul.f32.gmra.mxu0 %v1411
    %v1430 = vpop.f32.mrf.mxu0
    %v1431 = vadd.f32 %v929, %v1430
    %1432 = vdwg.mxu0
    %v1433 = vxor.u32 %v1431, 2147483648
    %v1434 = vmul.f32 %v1433, 1.442695
    %v1435 = vpow.pop %v1434
    %v1436 = vadd.f32 %v1435, 1.0
    %v1437 = vrcp.pop %v1436
    %v1438 = vmul.f32 %v1436, %v1437
    %v1439 = vsub.f32 1.0, %v1438
    %v1440 = vmul.f32 %v1437, %v1439
    %v1441 = vadd.f32 %v1437, %v1440
    %vm1442 = vweird.f32 %v1436
    %vm1443 = vweird.f32 %v1437
    %vm1444 = vmor %vm1442, %vm1443
    %v1445 = vsel %vm1444, %v1437, %v1441
    %v1446 = vand.u32 2147483647, %v1436
    %vm1447 = vcmp.eq.f32.partialorder %v1446, 8.507059e+37
    %v1448 = vand.u32 %v1436, 2147483648
    %v1449 = vor.u32 1.1754944e-38, %v1448
    %v1450 = vsel %vm1447, %v1449, %v1445
    %v1451 = vmul.f32 1.0, %v1450
    %v1452 = vtanh.pop %v1431
    %v1453 = vmul.f32 %v1451, %v1394
    %1455 = vrot.lane.b32.xlu0 %v1452, 80
    %v1456 = vpop.permute.xlu0 %1455
    %v1458 = vmul.f32 %v1451, %v1456
    %1460 = vrot.lane.b32.xlu0 %v1458, 16
    %v1461 = vpop.permute.xlu0 %1460
    %v1463 = vadd.f32 %v1453, %v1461
    %v1464 = vtanh.pop %v1463
    %1466 = vrot.lane.b32.xlu0 %v1464, 16
    %v1467 = vpop.permute.xlu0 %1466
    %v1469 = vmul.f32 %v1451, %v1467
    %1471 = vrot.lane.b32.xlu0 %v1469, 96
    %v1472 = vpop.permute.xlu0 %1471
    %v1474 = vrot.slane %v1469, 4
    %v1475 = vrot.slane %v1400, 4
    %v1476 = vrot.slane %v1331, 4
    %v1477 = vrot.slane %v1262, 4
    %v1478 = vrot.slane %v1193, 4
    %v1479 = vrot.slane %v1124, 4
    %v1480 = vrot.slane %v1055, 4
    %v1481 = vrot.slane %v986, 4
    %1482 = vrot.lane.b32.xlu0 %v1474, 112
    %v1483 = vpop.permute.xlu0 %1482
    %1484 = vrot.lane.b32.xlu0 %v1475, 112
    %v1485 = vpop.permute.xlu0 %1484
    %1486 = vrot.lane.b32.xlu0 %v1476, 112
    %v1487 = vpop.permute.xlu0 %1486
    %1488 = vrot.lane.b32.xlu0 %v1477, 112
    %v1489 = vpop.permute.xlu0 %1488
    %1490 = vrot.lane.b32.xlu0 %v1478, 112
    %v1491 = vpop.permute.xlu0 %1490
    %1492 = vrot.lane.b32.xlu0 %v1479, 112
    %v1493 = vpop.permute.xlu0 %1492
    %1494 = vrot.lane.b32.xlu0 %v1480, 112
    %v1495 = vpop.permute.xlu0 %1494
    %1496 = vrot.lane.b32.xlu0 %v1481, 112
    %v1497 = vpop.permute.xlu0 %1496
    %v1506 = vsel %vm271, %v989, %v1483
    %v1507 = vsel %vm271, %v1058, %v1485
    %v1508 = vsel %vm271, %v1127, %v1487
    %v1509 = vsel %vm271, %v1196, %v1489
    %v1510 = vsel %vm271, %v1265, %v1491
    %v1511 = vsel %vm271, %v1334, %v1493
    %v1512 = vsel %vm271, %v1403, %v1495
    %v1513 = vsel %vm271, %v1472, %v1497
    %v1514 = vld [vmem:[#allocation4 + $0x90] sm:$0xff]
    %v1515 = vld [vmem:[#allocation4 + $0x98] sm:$0xff]
    %v1516 = vld [vmem:[#allocation4 + $0xa0] sm:$0xff]
    %v1517 = vld [vmem:[#allocation4 + $0xa8] sm:$0xff]
    %v1518 = vld [vmem:[#allocation4 + $0xb0] sm:$0x1]
    %v1519 = vperm.slane %v1518, 0
    %1528 = vst [vmem:[#allocation1] ss:$2 sm:$0xff] %v1506
    %s1529 = scalar_lea.vmem [#allocation1], 1
    %1530 = vst [vmem:[%s1529] ss:$2 sm:$0xff] %v1507
    %s1531 = scalar_lea.vmem [#allocation1], 16
    %1532 = vst [vmem:[%s1531] ss:$2 sm:$0xff] %v1508
    %s1533 = scalar_lea.vmem [#allocation1], 17
    %1534 = vst [vmem:[%s1533] ss:$2 sm:$0xff] %v1509
    %s1535 = scalar_lea.vmem [#allocation1], 32
    %1536 = vst [vmem:[%s1535] ss:$2 sm:$0xff] %v1510
    %s1537 = scalar_lea.vmem [#allocation1], 33
    %1538 = vst [vmem:[%s1537] ss:$2 sm:$0xff] %v1511
    %s1539 = scalar_lea.vmem [#allocation1], 48
    %1540 = vst [vmem:[%s1539] ss:$2 sm:$0xff] %v1512
    %s1541 = scalar_lea.vmem [#allocation1], 49
    %1542 = vst [vmem:[%s1541] ss:$2 sm:$0xff] %v1513
    %v1543 = vld.sshfl [vmem:[#allocation1] sm:$0xff pattern:$0x75316420]
    %v1544 = vld.sshfl [vmem:[#allocation1 + $0x10] sm:$0xff pattern:$0x75316420]
    %v1545 = vld.sshfl [vmem:[#allocation1 + $0x20] sm:$0xff pattern:$0x75316420]
    %v1546 = vld.sshfl [vmem:[#allocation1 + $0x30] sm:$0xff pattern:$0x75316420]
    %v1547 = vsel %vm101, %v1543, 0
    %v1549 = vsel %vm101, %v1544, 0
    %v1551 = vsel %vm101, %v1545, 0
    %v1553 = vsel %vm101, %v1546, 0
    %1555 = vmatpush.msra.mxu0 0.0
    %1556 = vmatpush.msra.mxu0 0.0
    %1557 = vmatpush.msra.mxu0 0.0
    %1558 = vmatpush.msra.mxu0 0.0
    %1559 = vmatpush.msra.mxu0 0.0
    %1560 = vmatpush.msra.mxu0 0.0
    %1561 = vmatpush.msra.mxu0 0.0
    %1562 = vmatpush.msra.mxu0 0.0
    %1563 = vmatpush.msra.mxu0 0.0
    %1564 = vmatpush.msra.mxu0 0.0
    %1565 = vmatpush.msra.mxu0 0.0
    %1566 = vmatpush.msra.mxu0 0.0
    %1567 = vmatpush.msra.mxu0 %v1517
    %1568 = vmatpush.msra.mxu0 %v1516
    %1569 = vmatpush.msra.mxu0 %v1515
    %1570 = vmatpush.msra.mxu0 %v1514
    %1571 = vmatmul.f32.gmra.mxu0 %v1547
    %v1572 = vpop.f32.mrf.mxu0
    %v1573 = vadd.f32 %v1519, %v1572
    %1574 = vmatmul.f32.gmra.mxu0 %v1549
    %v1575 = vpop.f32.mrf.mxu0
    %v1576 = vadd.f32 %v1519, %v1575
    %1577 = vmatmul.f32.gmra.mxu0 %v1551
    %v1578 = vpop.f32.mrf.mxu0
    %v1579 = vadd.f32 %v1519, %v1578
    %1580 = vmatmul.f32.gmra.mxu0 %v1553
    %v1581 = vpop.f32.mrf.mxu0
    %v1582 = vadd.f32 %v1519, %v1581
    %1583 = vdwg.mxu0
    %1584 = vst [vmem:[%s2] sm:$0xff] %v1573
    %1585 = vst [vmem:[%s2 + $0x8] sm:$0xff] %v1576
    %1586 = vst [vmem:[%s2 + $0x10] sm:$0xff] %v1579
    %1587 = vst [vmem:[%s2 + $0x18] sm:$0xff] %v1582
    // Predicated region
    $region18: #{_forward_padded.1} parent=1 // pred_check
      _
    $region19: #{_forward_padded.1} parent=1 // pred_check_branch
      %1589 = sbr.rel (0) target = $region21
    $region20: #{_forward_padded.1} parent=1 // pred_region
      _
    $region21: #{_forward_padded.1} parent=1 // pred_fallthru
      _
    // Predicated region
    $region22: #{_forward_padded.1} parent=1 // pred_check
      _
    $region23: #{_forward_padded.1} parent=1 // pred_check_branch
      %1591 = sbr.rel (0) target = $region25
    $region24: #{_forward_padded.1} parent=1 // pred_region
      _
    $region25: #{_forward_padded.1} parent=1 // pred_fallthru
      _
    %1592 = vsyncpa [#allocation3], 1
    %1593 = vsyncpa [#allocation5], 1

</llo_original>
